<compile_context>
chip_gen: v6e
topology: v6e:2x2x1
jax: 0.10.0
libtpu: 0.0.40
codegen_flags: <defaults>
</compile_context>

<pallas_src>
import functools

import jax
import jax.numpy as jnp
from jax.experimental import pallas as pl
from jax.experimental.pallas import tpu as pltpu

NEG = -10000.0


def _round_up(n, m):
    return -(-n // m) * m


def _padded_block_bytes(L, T, TB):
    """Padding-aware VMEM footprint of one grid step (double-buffered), bytes."""
    lanes = _round_up(TB, 128)
    x_b = L * _round_up(T, 8) * lanes * 4
    mask_b = _round_up(L, 8) * lanes * 4
    tags_b = _round_up(L + 1, 8) * lanes * 4
    const_b = (_round_up(T, 8) + _round_up(T * T, 8) + _round_up(T, 8)) * 128 * 4
    out_b = 8 * lanes * 4
    return 2 * (x_b + mask_b + tags_b + const_b + out_b)


def crf_nll_kernel(x_ref, mask_ref, tags_ref, tpn_ref, tflat_ref, endc_ref, o_ref, *,
                   start_id, seq_len, tag_size):
    L = seq_len
    T = tag_size
    TB = x_ref.shape[-1]

    x = x_ref[...]          # (L, T, TB)
    mask = mask_ref[...]    # (L, TB)
    tags = tags_ref[...]    # (L+1, TB) int32
    tpn = tpn_ref[...]      # (T_prev, T_next, 1)
    tflat = tflat_ref[...]  # (T*T, 1)
    end_col = endc_ref[...]  # (T, 1)

    # ---- hoisted invariants (JAX does not CSE broadcast_in_dim) ----
    tag_srow = jax.lax.broadcasted_iota(jnp.int32, (T, TB), 0)        # sublane index

    # ---------------- forward algorithm (log-partition), batch on lanes ----------------
    alpha = jnp.where(tag_srow == start_id, 0.0, NEG)                 # (T, TB)
    # L is small & static here -> unrolled.
    # TODO(synk): for production-scale L switch to lax.fori_loop(..., unroll=2-4) carrying alpha and
    # stream x over an 'arbitrary' L grid axis so the BlockSpec pipeline hides the x DMA.
    for t in range(L):
        # scores[p, n, b] = alpha[p, b] + trans[n, p]; reduce over LEADING axis p = plain VPU max/add.
        scores = alpha[:, None, :] + tpn                              # (T_prev, T_next, TB)
        m = jnp.max(scores, axis=0)                                   # (T_next, TB)
        s = jnp.sum(jnp.exp(scores - m[None, :, :]), axis=0)          # (T_next, TB)
        # emission is constant over the reduced prev-tag axis -> add AFTER the logsumexp.
        new_alpha = m + jnp.log(s) + x[t]                             # (T, TB)
        alpha = jnp.where(mask[t:t + 1, :] > 0.0, new_alpha, alpha)

    final = alpha + end_col                                           # (T, TB)
    m_f = jnp.max(final, axis=0, keepdims=True)                       # (1, TB)
    fwd = m_f + jnp.log(jnp.sum(jnp.exp(final - m_f), axis=0, keepdims=True))   # (1, TB)

    # ---------------- gold path score (vectorized over L, pure VPU, no MXU) ----------------
    # NOTE: mask is assumed to be a contiguous prefix (like the torch code); interior holes would make
    # last_pos = sum(mask) pick the wrong last tag.
    next_tags = tags[1:, :]                                           # (L, TB)
    cur_tags = tags[:L, :]                                            # (L, TB)

    # emission x[l, next_tags[l,b], b] via one-hot over the tag (sublane) axis
    t_iota3 = jax.lax.broadcasted_iota(jnp.int32, (L, T, TB), 1)
    oh_next = (t_iota3 == next_tags[:, None, :]).astype(jnp.float32)  # (L, T, TB)
    emit_s = jnp.sum(x * oh_next, axis=1)                             # (L, TB)

    # transition[next, cur] via one flattened T*T one-hot (T << 128, MXU would be pure fill/drain)
    # TODO(synk): for production-scale L chunk this (L, T*T, TB) one-hot over L inside a fori_loop.
    flat_idx = next_tags * T + cur_tags                               # (L, TB)
    k_iota = jax.lax.broadcasted_iota(jnp.int32, (L, T * T, TB), 1)
    oh_flat = (k_iota == flat_idx[:, None, :]).astype(jnp.float32)    # (L, T*T, TB)
    trans_s = jnp.sum(oh_flat * tflat[None, :, :], axis=1)            # (L, TB)

    step_score = jnp.sum(mask * (emit_s + trans_s), axis=0, keepdims=True)          # (1, TB)

    # last tag = tags[sum(mask)]  (gather via one-hot over the L+1 axis)
    last_pos = jnp.sum(mask, axis=0, keepdims=True).astype(jnp.int32)                # (1, TB)
    pos_iota = jax.lax.broadcasted_iota(jnp.int32, (L + 1, TB), 0)
    last_tag = jnp.sum(jnp.where(pos_iota == last_pos, tags, 0), axis=0, keepdims=True)  # (1, TB)
    oh_last = (tag_srow == last_tag).astype(jnp.float32)                              # (T, TB)
    end_s = jnp.sum(end_col * oh_last, axis=0, keepdims=True)                         # (1, TB)

    # lane-dense store (batch already on lanes, no transpose needed)
    o_ref[...] = fwd - (step_score + end_s)                                           # (1, TB)


def crf_forward(x, tags, mask, transition, *, start_id, end_id, batch_tile=None):
    """Returns forward_score - gold_score, shape (B,). x: (B,L,T), tags: (B,L+1), mask: (B,L)."""
    B, L, T = x.shape

    # ---- host-side layout plumbing (cheap XLA ops, keeps the kernel relayout-free) ----
    x_t = jnp.transpose(x, (1, 2, 0))                       # (L, T, B)
    mask_t = jnp.transpose(mask)                            # (L, B)
    tags_t = jnp.transpose(tags)                            # (L+1, B)
    trans_pn = jnp.transpose(transition)[:, :, None]        # (T_prev, T_next, 1)
    trans_flat = transition.reshape(T * T, 1)               # (T*T, 1)  [next*T + cur]
    end_col = transition[end_id][:, None]                   # (T, 1)

    if batch_tile is None:
        batch_tile = B                                      # single block: no grid overhead on 1-TC chips
        if B % 256 == 0:
            # large 128-aligned batch: keep >= 2 blocks so v7x's 2 TensorCores can split the grid,
            # with TB a multiple of 128 (unmasked lane-dense stores) and a padding-aware VMEM bound.
            vmem_budget = 24 << 20                          # headroom under v7x's 32 MiB default scoped
            tb = (B // 2) // 128 * 128
            while tb > 128 and (B % tb or _padded_block_bytes(L, T, tb) > vmem_budget):
                tb -= 128
            batch_tile = max(128, tb)
    TB = batch_tile
    assert B % TB == 0 and (TB == B or TB % 128 == 0), (B, TB)
    G = B // TB

    kernel = functools.partial(crf_nll_kernel, start_id=start_id, seq_len=L, tag_size=T)

    flops = int(B * L * (5 * T * T + 8 * T + 4 * T * T) + 8 * B * T)
    transcendentals = int(B * L * (T * T + T) + 2 * B * T)
    bytes_accessed = int(4 * (x.size + mask.size + tags.size + 3 * transition.size + B))

    vmem_limit = min(64 << 20, max(16 << 20, _padded_block_bytes(L, T, TB) + (4 << 20)))

    out = pl.pallas_call(
        kernel,
        out_shape=jax.ShapeDtypeStruct((1, B), jnp.float32),
        grid_spec=pltpu.PrefetchScalarGridSpec(
            num_scalar_prefetch=0,
            grid=(G,),
            in_specs=[
                pl.BlockSpec((L, T, TB), lambda g: (0, 0, g)),        # x_t
                pl.BlockSpec((L, TB), lambda g: (0, g)),              # mask_t
                pl.BlockSpec((L + 1, TB), lambda g: (0, g)),          # tags_t
                pl.BlockSpec((T, T, 1), lambda g: (0, 0, 0)),         # trans_pn (shared)
                pl.BlockSpec((T * T, 1), lambda g: (0, 0)),           # trans_flat (shared)
                pl.BlockSpec((T, 1), lambda g: (0, 0)),               # end_col (shared)
            ],
            out_specs=pl.BlockSpec((1, TB), lambda g: (0, g)),
        ),
        # TODO(synk): on v7x, verify "parallel" shards the batch grid across the 2 TensorCores;
        # otherwise switch to pltpu.CORE_PARALLEL / an explicit pl.core_map split of the batch axis.
        compiler_params=pltpu.CompilerParams(
            dimension_semantics=("parallel",),
            vmem_limit_bytes=vmem_limit,
        ),
        cost_estimate=pl.CostEstimate(flops=flops,
                                      transcendentals=transcendentals,
                                      bytes_accessed=bytes_accessed),
    )(x_t, mask_t, tags_t, trans_pn, trans_flat, end_col)
    return out.reshape(B)


def crf_reference(x, tags, mask, trans, start_id, end_id):
    """Pure-JAX reference mirroring the PyTorch CRF semantics."""
    B, L, T = x.shape
    alpha = jnp.full((B, T), NEG).at[:, start_id].set(0.0)
    for t in range(L):
        s = alpha[:, None, :] + x[:, t, :, None] + trans[None, :, :]
        new_alpha = jax.scipy.special.logsumexp(s, axis=-1)
        m = mask[:, t:t + 1]
        alpha = new_alpha * m + alpha * (1.0 - m)
    fwd = jax.scipy.special.logsumexp(alpha + trans[end_id][None, :], axis=-1)

    score = jnp.zeros((B,), jnp.float32)
    for t in range(L):
        nt = tags[:, t + 1]
        ct = tags[:, t]
        emit = x[jnp.arange(B), t, nt]
        tr = trans[nt, ct]
        score = score + mask[:, t] * (emit + tr)
    last_pos = jnp.sum(mask, axis=1).astype(jnp.int32)
    last_tag = tags[jnp.arange(B), last_pos]
    score = score + trans[end_id, last_tag]
    return fwd - score


if __name__ == "__main__":
    key = jax.random.PRNGKey(0)
    T = 8
    start_id, end_id, pad_id = 0, 1, 2

    # Deterministic parameter init: xavier_normal on (T, T), then the CRF constraints the module
    # applies in __init__ (the PyTorch code's init order is buggy; standard constrain-after-init).
    k1, key = jax.random.split(key)
    std = (2.0 / (T + T)) ** 0.5
    trans = jax.random.normal(k1, (T, T), jnp.float32) * std
    trans = trans.at[start_id, :].set(NEG)
    trans = trans.at[:, end_id].set(NEG)
    trans = trans.at[:, pad_id].set(NEG)
    trans = trans.at[pad_id, :].set(NEG)
    trans = trans.at[pad_id, end_id].set(0.0)
    trans = trans.at[pad_id, pad_id].set(0.0)

    def make_inputs(k, B, L):
        k2, k3, k4 = jax.random.split(k, 3)
        x = jax.random.normal(k2, (B, L, T), jnp.float32)
        body = jax.random.randint(k3, (B, L), 3, T).astype(jnp.int32)   # avoid special tags
        tags = jnp.concatenate([jnp.full((B, 1), start_id, jnp.int32), body], axis=1)  # (B, L+1)
        lengths = jax.random.randint(k4, (B,), 1, L + 1).astype(jnp.int32)
        msk = (jax.lax.broadcasted_iota(jnp.int32, (B, L), 1)
               < lengths[:, None]).astype(jnp.float32)
        return x, tags, msk

    # (B=2), (B=16): single whole-array block.  (B=256): exercises the batch grid (TB=128, G=2).
    for (B, L) in [(2, 8), (16, 8), (256, 8)]:
        kx, key = jax.random.split(key)
        x, tags, mask = make_inputs(kx, B, L)
        out = crf_forward(x, tags, mask, trans, start_id=start_id, end_id=end_id)
        jax.block_until_ready(out)
        ref = crf_reference(x, tags, mask, trans, start_id, end_id)
        assert jnp.allclose(out, ref, atol=1e-3, rtol=1e-3), (B, L, out, ref)

    # TODO(synk): _viterbi_decode's host-side backpointer traversal (Python lists) is decode-only,
    # not part of forward(), and is intentionally omitted.
    print("KERNEL_OK")
</pallas_src>

<mosaic_0001>
module attributes {stable_mosaic.version = 11 : i64} {
  func.func @crf_nll_kernel(%arg0: i32, %arg1: memref<8x8x2xf32, #tpu.memory_space<vmem>>, %arg2: memref<8x2xf32, #tpu.memory_space<vmem>>, %arg3: memref<9x2xi32, #tpu.memory_space<vmem>>, %arg4: memref<8x8x1xf32, #tpu.memory_space<vmem>>, %arg5: memref<64x1xf32, #tpu.memory_space<vmem>>, %arg6: memref<8x1xf32, #tpu.memory_space<vmem>>, %arg7: memref<1x2xf32, #tpu.memory_space<vmem>>) attributes {dimension_semantics = [#tpu.dimension_semantics<parallel>], iteration_bounds = array<i64: 1>, scalar_prefetch = 0 : i64, scratch_operands = 0 : i64, tpu.core_type = #tpu.core_type<tc>, window_params = [{transform_indices = @transform_0, window_bounds = array<i64: 8, 8, 2>}, {transform_indices = @transform_1, window_bounds = array<i64: 8, 2>}, {transform_indices = @transform_2, window_bounds = array<i64: 9, 2>}, {pipeline_mode = #tpu.pipeline_mode<synchronous>, transform_indices = @transform_3, window_bounds = array<i64: 8, 8, 1>}, {pipeline_mode = #tpu.pipeline_mode<synchronous>, transform_indices = @transform_4, window_bounds = array<i64: 64, 1>}, {pipeline_mode = #tpu.pipeline_mode<synchronous>, transform_indices = @transform_5, window_bounds = array<i64: 8, 1>}, {transform_indices = @transform_6, window_bounds = array<i64: 1, 2>}]} {
    %c0 = arith.constant 0 : index
    %c0_0 = arith.constant 0 : index
    %c0_1 = arith.constant 0 : index
    %0 = vector.load %arg1[%c0, %c0_0, %c0_1] : memref<8x8x2xf32, #tpu.memory_space<vmem>>, vector<8x8x2xf32>
    %c0_2 = arith.constant 0 : index
    %c0_3 = arith.constant 0 : index
    %1 = vector.load %arg2[%c0_2, %c0_3] : memref<8x2xf32, #tpu.memory_space<vmem>>, vector<8x2xf32>
    %c0_4 = arith.constant 0 : index
    %c0_5 = arith.constant 0 : index
    %2 = vector.load %arg3[%c0_4, %c0_5] : memref<9x2xi32, #tpu.memory_space<vmem>>, vector<9x2xi32>
    %c0_6 = arith.constant 0 : index
    %c0_7 = arith.constant 0 : index
    %c0_8 = arith.constant 0 : index
    %3 = vector.load %arg4[%c0_6, %c0_7, %c0_8] : memref<8x8x1xf32, #tpu.memory_space<vmem>>, vector<8x8x1xf32>
    %c0_9 = arith.constant 0 : index
    %c0_10 = arith.constant 0 : index
    %4 = vector.load %arg5[%c0_9, %c0_10] : memref<64x1xf32, #tpu.memory_space<vmem>>, vector<64x1xf32>
    %c0_11 = arith.constant 0 : index
    %c0_12 = arith.constant 0 : index
    %5 = vector.load %arg6[%c0_11, %c0_12] : memref<8x1xf32, #tpu.memory_space<vmem>>, vector<8x1xf32>
    %6 = tpu.iota {dimensions = array<i32: 0>} : vector<8x2xi32>
    %c0_i32 = arith.constant 0 : i32
    %7 = vector.broadcast %c0_i32 : i32 to vector<8x2xi32>
    %8 = arith.cmpi eq, %6, %7 : vector<8x2xi32>
    %cst = arith.constant 0.000000e+00 : f32
    %cst_13 = arith.constant -1.000000e+04 : f32
    %9 = vector.broadcast %cst : f32 to vector<8x2xf32>
    %10 = vector.broadcast %cst_13 : f32 to vector<8x2xf32>
    %11 = arith.select %8, %9, %10 : vector<8x2xi1>, vector<8x2xf32>
    %12 = vector.shape_cast %11 : vector<8x2xf32> to vector<8x1x2xf32>
    %13 = vector.broadcast %12 : vector<8x1x2xf32> to vector<8x8x2xf32>
    %14 = vector.broadcast %3 : vector<8x8x1xf32> to vector<8x8x2xf32>
    %15 = arith.addf %13, %14 : vector<8x8x2xf32>
    %cst_14 = arith.constant dense<0xFF800000> : vector<8x2xf32>
    %16 = vector.multi_reduction <maximumf>, %15, %cst_14 [0] : vector<8x8x2xf32> to vector<8x2xf32>
    %17 = vector.shape_cast %16 : vector<8x2xf32> to vector<1x8x2xf32>
    %18 = vector.broadcast %17 : vector<1x8x2xf32> to vector<8x8x2xf32>
    %19 = arith.subf %15, %18 : vector<8x8x2xf32>
    %20 = math.exp %19 : vector<8x8x2xf32>
    %cst_15 = arith.constant dense<0.000000e+00> : vector<8x2xf32>
    %21 = vector.multi_reduction <add>, %20, %cst_15 [0] : vector<8x8x2xf32> to vector<8x2xf32>
    %22 = math.log %21 : vector<8x2xf32>
    %23 = arith.addf %16, %22 : vector<8x2xf32>
    %24 = vector.extract_strided_slice %0 {offsets = [0, 0, 0], sizes = [1, 8, 2], strides = [1, 1, 1]} : vector<8x8x2xf32> to vector<1x8x2xf32>
    %25 = vector.shape_cast %24 : vector<1x8x2xf32> to vector<8x2xf32>
    %26 = arith.addf %23, %25 : vector<8x2xf32>
    %27 = vector.extract_strided_slice %1 {offsets = [0, 0], sizes = [1, 2], strides = [1, 1]} : vector<8x2xf32> to vector<1x2xf32>
    %cst_16 = arith.constant 0.000000e+00 : f32
    %28 = vector.broadcast %cst_16 : f32 to vector<1x2xf32>
    %29 = arith.cmpf ogt, %27, %28 : vector<1x2xf32>
    %30 = vector.shape_cast %29 : vector<1x2xi1> to vector<1x2xi1>
    %31 = vector.broadcast %30 : vector<1x2xi1> to vector<8x2xi1>
    %32 = arith.select %31, %26, %11 : vector<8x2xi1>, vector<8x2xf32>
    %33 = vector.shape_cast %32 : vector<8x2xf32> to vector<8x1x2xf32>
    %34 = vector.broadcast %33 : vector<8x1x2xf32> to vector<8x8x2xf32>
    %35 = vector.broadcast %3 : vector<8x8x1xf32> to vector<8x8x2xf32>
    %36 = arith.addf %34, %35 : vector<8x8x2xf32>
    %cst_17 = arith.constant dense<0xFF800000> : vector<8x2xf32>
    %37 = vector.multi_reduction <maximumf>, %36, %cst_17 [0] : vector<8x8x2xf32> to vector<8x2xf32>
    %38 = vector.shape_cast %37 : vector<8x2xf32> to vector<1x8x2xf32>
    %39 = vector.broadcast %38 : vector<1x8x2xf32> to vector<8x8x2xf32>
    %40 = arith.subf %36, %39 : vector<8x8x2xf32>
    %41 = math.exp %40 : vector<8x8x2xf32>
    %cst_18 = arith.constant dense<0.000000e+00> : vector<8x2xf32>
    %42 = vector.multi_reduction <add>, %41, %cst_18 [0] : vector<8x8x2xf32> to vector<8x2xf32>
    %43 = math.log %42 : vector<8x2xf32>
    %44 = arith.addf %37, %43 : vector<8x2xf32>
    %45 = vector.extract_strided_slice %0 {offsets = [1, 0, 0], sizes = [1, 8, 2], strides = [1, 1, 1]} : vector<8x8x2xf32> to vector<1x8x2xf32>
    %46 = vector.shape_cast %45 : vector<1x8x2xf32> to vector<8x2xf32>
    %47 = arith.addf %44, %46 : vector<8x2xf32>
    %48 = vector.extract_strided_slice %1 {offsets = [1, 0], sizes = [1, 2], strides = [1, 1]} : vector<8x2xf32> to vector<1x2xf32>
    %cst_19 = arith.constant 0.000000e+00 : f32
    %49 = vector.broadcast %cst_19 : f32 to vector<1x2xf32>
    %50 = arith.cmpf ogt, %48, %49 : vector<1x2xf32>
    %51 = vector.shape_cast %50 : vector<1x2xi1> to vector<1x2xi1>
    %52 = vector.broadcast %51 : vector<1x2xi1> to vector<8x2xi1>
    %53 = arith.select %52, %47, %32 : vector<8x2xi1>, vector<8x2xf32>
    %54 = vector.shape_cast %53 : vector<8x2xf32> to vector<8x1x2xf32>
    %55 = vector.broadcast %54 : vector<8x1x2xf32> to vector<8x8x2xf32>
    %56 = vector.broadcast %3 : vector<8x8x1xf32> to vector<8x8x2xf32>
    %57 = arith.addf %55, %56 : vector<8x8x2xf32>
    %cst_20 = arith.constant dense<0xFF800000> : vector<8x2xf32>
    %58 = vector.multi_reduction <maximumf>, %57, %cst_20 [0] : vector<8x8x2xf32> to vector<8x2xf32>
    %59 = vector.shape_cast %58 : vector<8x2xf32> to vector<1x8x2xf32>
    %60 = vector.broadcast %59 : vector<1x8x2xf32> to vector<8x8x2xf32>
    %61 = arith.subf %57, %60 : vector<8x8x2xf32>
    %62 = math.exp %61 : vector<8x8x2xf32>
    %cst_21 = arith.constant dense<0.000000e+00> : vector<8x2xf32>
    %63 = vector.multi_reduction <add>, %62, %cst_21 [0] : vector<8x8x2xf32> to vector<8x2xf32>
    %64 = math.log %63 : vector<8x2xf32>
    %65 = arith.addf %58, %64 : vector<8x2xf32>
    %66 = vector.extract_strided_slice %0 {offsets = [2, 0, 0], sizes = [1, 8, 2], strides = [1, 1, 1]} : vector<8x8x2xf32> to vector<1x8x2xf32>
    %67 = vector.shape_cast %66 : vector<1x8x2xf32> to vector<8x2xf32>
    %68 = arith.addf %65, %67 : vector<8x2xf32>
    %69 = vector.extract_strided_slice %1 {offsets = [2, 0], sizes = [1, 2], strides = [1, 1]} : vector<8x2xf32> to vector<1x2xf32>
    %cst_22 = arith.constant 0.000000e+00 : f32
    %70 = vector.broadcast %cst_22 : f32 to vector<1x2xf32>
    %71 = arith.cmpf ogt, %69, %70 : vector<1x2xf32>
    %72 = vector.shape_cast %71 : vector<1x2xi1> to vector<1x2xi1>
    %73 = vector.broadcast %72 : vector<1x2xi1> to vector<8x2xi1>
    %74 = arith.select %73, %68, %53 : vector<8x2xi1>, vector<8x2xf32>
    %75 = vector.shape_cast %74 : vector<8x2xf32> to vector<8x1x2xf32>
    %76 = vector.broadcast %75 : vector<8x1x2xf32> to vector<8x8x2xf32>
    %77 = vector.broadcast %3 : vector<8x8x1xf32> to vector<8x8x2xf32>
    %78 = arith.addf %76, %77 : vector<8x8x2xf32>
    %cst_23 = arith.constant dense<0xFF800000> : vector<8x2xf32>
    %79 = vector.multi_reduction <maximumf>, %78, %cst_23 [0] : vector<8x8x2xf32> to vector<8x2xf32>
    %80 = vector.shape_cast %79 : vector<8x2xf32> to vector<1x8x2xf32>
    %81 = vector.broadcast %80 : vector<1x8x2xf32> to vector<8x8x2xf32>
    %82 = arith.subf %78, %81 : vector<8x8x2xf32>
    %83 = math.exp %82 : vector<8x8x2xf32>
    %cst_24 = arith.constant dense<0.000000e+00> : vector<8x2xf32>
    %84 = vector.multi_reduction <add>, %83, %cst_24 [0] : vector<8x8x2xf32> to vector<8x2xf32>
    %85 = math.log %84 : vector<8x2xf32>
    %86 = arith.addf %79, %85 : vector<8x2xf32>
    %87 = vector.extract_strided_slice %0 {offsets = [3, 0, 0], sizes = [1, 8, 2], strides = [1, 1, 1]} : vector<8x8x2xf32> to vector<1x8x2xf32>
    %88 = vector.shape_cast %87 : vector<1x8x2xf32> to vector<8x2xf32>
    %89 = arith.addf %86, %88 : vector<8x2xf32>
    %90 = vector.extract_strided_slice %1 {offsets = [3, 0], sizes = [1, 2], strides = [1, 1]} : vector<8x2xf32> to vector<1x2xf32>
    %cst_25 = arith.constant 0.000000e+00 : f32
    %91 = vector.broadcast %cst_25 : f32 to vector<1x2xf32>
    %92 = arith.cmpf ogt, %90, %91 : vector<1x2xf32>
    %93 = vector.shape_cast %92 : vector<1x2xi1> to vector<1x2xi1>
    %94 = vector.broadcast %93 : vector<1x2xi1> to vector<8x2xi1>
    %95 = arith.select %94, %89, %74 : vector<8x2xi1>, vector<8x2xf32>
    %96 = vector.shape_cast %95 : vector<8x2xf32> to vector<8x1x2xf32>
    %97 = vector.broadcast %96 : vector<8x1x2xf32> to vector<8x8x2xf32>
    %98 = vector.broadcast %3 : vector<8x8x1xf32> to vector<8x8x2xf32>
    %99 = arith.addf %97, %98 : vector<8x8x2xf32>
    %cst_26 = arith.constant dense<0xFF800000> : vector<8x2xf32>
    %100 = vector.multi_reduction <maximumf>, %99, %cst_26 [0] : vector<8x8x2xf32> to vector<8x2xf32>
    %101 = vector.shape_cast %100 : vector<8x2xf32> to vector<1x8x2xf32>
    %102 = vector.broadcast %101 : vector<1x8x2xf32> to vector<8x8x2xf32>
    %103 = arith.subf %99, %102 : vector<8x8x2xf32>
    %104 = math.exp %103 : vector<8x8x2xf32>
    %cst_27 = arith.constant dense<0.000000e+00> : vector<8x2xf32>
    %105 = vector.multi_reduction <add>, %104, %cst_27 [0] : vector<8x8x2xf32> to vector<8x2xf32>
    %106 = math.log %105 : vector<8x2xf32>
    %107 = arith.addf %100, %106 : vector<8x2xf32>
    %108 = vector.extract_strided_slice %0 {offsets = [4, 0, 0], sizes = [1, 8, 2], strides = [1, 1, 1]} : vector<8x8x2xf32> to vector<1x8x2xf32>
    %109 = vector.shape_cast %108 : vector<1x8x2xf32> to vector<8x2xf32>
    %110 = arith.addf %107, %109 : vector<8x2xf32>
    %111 = vector.extract_strided_slice %1 {offsets = [4, 0], sizes = [1, 2], strides = [1, 1]} : vector<8x2xf32> to vector<1x2xf32>
    %cst_28 = arith.constant 0.000000e+00 : f32
    %112 = vector.broadcast %cst_28 : f32 to vector<1x2xf32>
    %113 = arith.cmpf ogt, %111, %112 : vector<1x2xf32>
    %114 = vector.shape_cast %113 : vector<1x2xi1> to vector<1x2xi1>
    %115 = vector.broadcast %114 : vector<1x2xi1> to vector<8x2xi1>
    %116 = arith.select %115, %110, %95 : vector<8x2xi1>, vector<8x2xf32>
    %117 = vector.shape_cast %116 : vector<8x2xf32> to vector<8x1x2xf32>
    %118 = vector.broadcast %117 : vector<8x1x2xf32> to vector<8x8x2xf32>
    %119 = vector.broadcast %3 : vector<8x8x1xf32> to vector<8x8x2xf32>
    %120 = arith.addf %118, %119 : vector<8x8x2xf32>
    %cst_29 = arith.constant dense<0xFF800000> : vector<8x2xf32>
    %121 = vector.multi_reduction <maximumf>, %120, %cst_29 [0] : vector<8x8x2xf32> to vector<8x2xf32>
    %122 = vector.shape_cast %121 : vector<8x2xf32> to vector<1x8x2xf32>
    %123 = vector.broadcast %122 : vector<1x8x2xf32> to vector<8x8x2xf32>
    %124 = arith.subf %120, %123 : vector<8x8x2xf32>
    %125 = math.exp %124 : vector<8x8x2xf32>
    %cst_30 = arith.constant dense<0.000000e+00> : vector<8x2xf32>
    %126 = vector.multi_reduction <add>, %125, %cst_30 [0] : vector<8x8x2xf32> to vector<8x2xf32>
    %127 = math.log %126 : vector<8x2xf32>
    %128 = arith.addf %121, %127 : vector<8x2xf32>
    %129 = vector.extract_strided_slice %0 {offsets = [5, 0, 0], sizes = [1, 8, 2], strides = [1, 1, 1]} : vector<8x8x2xf32> to vector<1x8x2xf32>
    %130 = vector.shape_cast %129 : vector<1x8x2xf32> to vector<8x2xf32>
    %131 = arith.addf %128, %130 : vector<8x2xf32>
    %132 = vector.extract_strided_slice %1 {offsets = [5, 0], sizes = [1, 2], strides = [1, 1]} : vector<8x2xf32> to vector<1x2xf32>
    %cst_31 = arith.constant 0.000000e+00 : f32
    %133 = vector.broadcast %cst_31 : f32 to vector<1x2xf32>
    %134 = arith.cmpf ogt, %132, %133 : vector<1x2xf32>
    %135 = vector.shape_cast %134 : vector<1x2xi1> to vector<1x2xi1>
    %136 = vector.broadcast %135 : vector<1x2xi1> to vector<8x2xi1>
    %137 = arith.select %136, %131, %116 : vector<8x2xi1>, vector<8x2xf32>
    %138 = vector.shape_cast %137 : vector<8x2xf32> to vector<8x1x2xf32>
    %139 = vector.broadcast %138 : vector<8x1x2xf32> to vector<8x8x2xf32>
    %140 = vector.broadcast %3 : vector<8x8x1xf32> to vector<8x8x2xf32>
    %141 = arith.addf %139, %140 : vector<8x8x2xf32>
    %cst_32 = arith.constant dense<0xFF800000> : vector<8x2xf32>
    %142 = vector.multi_reduction <maximumf>, %141, %cst_32 [0] : vector<8x8x2xf32> to vector<8x2xf32>
    %143 = vector.shape_cast %142 : vector<8x2xf32> to vector<1x8x2xf32>
    %144 = vector.broadcast %143 : vector<1x8x2xf32> to vector<8x8x2xf32>
    %145 = arith.subf %141, %144 : vector<8x8x2xf32>
    %146 = math.exp %145 : vector<8x8x2xf32>
    %cst_33 = arith.constant dense<0.000000e+00> : vector<8x2xf32>
    %147 = vector.multi_reduction <add>, %146, %cst_33 [0] : vector<8x8x2xf32> to vector<8x2xf32>
    %148 = math.log %147 : vector<8x2xf32>
    %149 = arith.addf %142, %148 : vector<8x2xf32>
    %150 = vector.extract_strided_slice %0 {offsets = [6, 0, 0], sizes = [1, 8, 2], strides = [1, 1, 1]} : vector<8x8x2xf32> to vector<1x8x2xf32>
    %151 = vector.shape_cast %150 : vector<1x8x2xf32> to vector<8x2xf32>
    %152 = arith.addf %149, %151 : vector<8x2xf32>
    %153 = vector.extract_strided_slice %1 {offsets = [6, 0], sizes = [1, 2], strides = [1, 1]} : vector<8x2xf32> to vector<1x2xf32>
    %cst_34 = arith.constant 0.000000e+00 : f32
    %154 = vector.broadcast %cst_34 : f32 to vector<1x2xf32>
    %155 = arith.cmpf ogt, %153, %154 : vector<1x2xf32>
    %156 = vector.shape_cast %155 : vector<1x2xi1> to vector<1x2xi1>
    %157 = vector.broadcast %156 : vector<1x2xi1> to vector<8x2xi1>
    %158 = arith.select %157, %152, %137 : vector<8x2xi1>, vector<8x2xf32>
    %159 = vector.shape_cast %158 : vector<8x2xf32> to vector<8x1x2xf32>
    %160 = vector.broadcast %159 : vector<8x1x2xf32> to vector<8x8x2xf32>
    %161 = vector.broadcast %3 : vector<8x8x1xf32> to vector<8x8x2xf32>
    %162 = arith.addf %160, %161 : vector<8x8x2xf32>
    %cst_35 = arith.constant dense<0xFF800000> : vector<8x2xf32>
    %163 = vector.multi_reduction <maximumf>, %162, %cst_35 [0] : vector<8x8x2xf32> to vector<8x2xf32>
    %164 = vector.shape_cast %163 : vector<8x2xf32> to vector<1x8x2xf32>
    %165 = vector.broadcast %164 : vector<1x8x2xf32> to vector<8x8x2xf32>
    %166 = arith.subf %162, %165 : vector<8x8x2xf32>
    %167 = math.exp %166 : vector<8x8x2xf32>
    %cst_36 = arith.constant dense<0.000000e+00> : vector<8x2xf32>
    %168 = vector.multi_reduction <add>, %167, %cst_36 [0] : vector<8x8x2xf32> to vector<8x2xf32>
    %169 = math.log %168 : vector<8x2xf32>
    %170 = arith.addf %163, %169 : vector<8x2xf32>
    %171 = vector.extract_strided_slice %0 {offsets = [7, 0, 0], sizes = [1, 8, 2], strides = [1, 1, 1]} : vector<8x8x2xf32> to vector<1x8x2xf32>
    %172 = vector.shape_cast %171 : vector<1x8x2xf32> to vector<8x2xf32>
    %173 = arith.addf %170, %172 : vector<8x2xf32>
    %174 = vector.extract_strided_slice %1 {offsets = [7, 0], sizes = [1, 2], strides = [1, 1]} : vector<8x2xf32> to vector<1x2xf32>
    %cst_37 = arith.constant 0.000000e+00 : f32
    %175 = vector.broadcast %cst_37 : f32 to vector<1x2xf32>
    %176 = arith.cmpf ogt, %174, %175 : vector<1x2xf32>
    %177 = vector.shape_cast %176 : vector<1x2xi1> to vector<1x2xi1>
    %178 = vector.broadcast %177 : vector<1x2xi1> to vector<8x2xi1>
    %179 = arith.select %178, %173, %158 : vector<8x2xi1>, vector<8x2xf32>
    %180 = vector.broadcast %5 : vector<8x1xf32> to vector<8x2xf32>
    %181 = arith.addf %179, %180 : vector<8x2xf32>
    %cst_38 = arith.constant dense<0xFF800000> : vector<2xf32>
    %182 = vector.multi_reduction <maximumf>, %181, %cst_38 [0] : vector<8x2xf32> to vector<2xf32>
    %183 = vector.shape_cast %182 : vector<2xf32> to vector<1x2xf32>
    %184 = vector.broadcast %183 : vector<1x2xf32> to vector<8x2xf32>
    %185 = arith.subf %181, %184 : vector<8x2xf32>
    %186 = math.exp %185 : vector<8x2xf32>
    %cst_39 = arith.constant dense<0.000000e+00> : vector<2xf32>
    %187 = vector.multi_reduction <add>, %186, %cst_39 [0] : vector<8x2xf32> to vector<2xf32>
    %188 = vector.shape_cast %187 : vector<2xf32> to vector<1x2xf32>
    %189 = math.log %188 : vector<1x2xf32>
    %190 = arith.addf %183, %189 : vector<1x2xf32>
    %191 = vector.extract_strided_slice %2 {offsets = [1, 0], sizes = [8, 2], strides = [1, 1]} : vector<9x2xi32> to vector<8x2xi32>
    %192 = vector.extract_strided_slice %2 {offsets = [0, 0], sizes = [8, 2], strides = [1, 1]} : vector<9x2xi32> to vector<8x2xi32>
    %193 = tpu.iota {dimensions = array<i32: 1>} : vector<8x8x2xi32>
    %194 = vector.shape_cast %191 : vector<8x2xi32> to vector<8x1x2xi32>
    %195 = vector.broadcast %194 : vector<8x1x2xi32> to vector<8x8x2xi32>
    %196 = arith.cmpi eq, %193, %195 : vector<8x8x2xi32>
    %197 = arith.extui %196 : vector<8x8x2xi1> to vector<8x8x2xi32>
    %198 = arith.sitofp %197 : vector<8x8x2xi32> to vector<8x8x2xf32>
    %199 = arith.mulf %0, %198 : vector<8x8x2xf32>
    %cst_40 = arith.constant dense<0.000000e+00> : vector<8x2xf32>
    %200 = vector.multi_reduction <add>, %199, %cst_40 [1] : vector<8x8x2xf32> to vector<8x2xf32>
    %c8_i32 = arith.constant 8 : i32
    %201 = vector.broadcast %c8_i32 : i32 to vector<8x2xi32>
    %202 = arith.muli %191, %201 : vector<8x2xi32>
    %203 = arith.addi %202, %192 : vector<8x2xi32>
    %204 = tpu.iota {dimensions = array<i32: 1>} : vector<8x64x2xi32>
    %205 = vector.shape_cast %203 : vector<8x2xi32> to vector<8x1x2xi32>
    %206 = vector.broadcast %205 : vector<8x1x2xi32> to vector<8x64x2xi32>
    %207 = arith.cmpi eq, %204, %206 : vector<8x64x2xi32>
    %208 = arith.extui %207 : vector<8x64x2xi1> to vector<8x64x2xi32>
    %209 = arith.sitofp %208 : vector<8x64x2xi32> to vector<8x64x2xf32>
    %210 = vector.shape_cast %4 : vector<64x1xf32> to vector<1x64x1xf32>
    %211 = vector.broadcast %210 : vector<1x64x1xf32> to vector<8x64x2xf32>
    %212 = arith.mulf %209, %211 : vector<8x64x2xf32>
    %cst_41 = arith.constant dense<0.000000e+00> : vector<8x2xf32>
    %213 = vector.multi_reduction <add>, %212, %cst_41 [1] : vector<8x64x2xf32> to vector<8x2xf32>
    %214 = arith.addf %200, %213 : vector<8x2xf32>
    %215 = arith.mulf %1, %214 : vector<8x2xf32>
    %cst_42 = arith.constant dense<0.000000e+00> : vector<2xf32>
    %216 = vector.multi_reduction <add>, %215, %cst_42 [0] : vector<8x2xf32> to vector<2xf32>
    %217 = vector.shape_cast %216 : vector<2xf32> to vector<1x2xf32>
    %cst_43 = arith.constant dense<0.000000e+00> : vector<2xf32>
    %218 = vector.multi_reduction <add>, %1, %cst_43 [0] : vector<8x2xf32> to vector<2xf32>
    %219 = vector.shape_cast %218 : vector<2xf32> to vector<1x2xf32>
    %220 = arith.fptosi %219 : vector<1x2xf32> to vector<1x2xi32>
    %221 = tpu.iota {dimensions = array<i32: 0>} : vector<9x2xi32>
    %222 = vector.broadcast %220 : vector<1x2xi32> to vector<9x2xi32>
    %223 = arith.cmpi eq, %221, %222 : vector<9x2xi32>
    %c0_i32_44 = arith.constant 0 : i32
    %224 = vector.broadcast %c0_i32_44 : i32 to vector<9x2xi32>
    %225 = arith.select %223, %2, %224 : vector<9x2xi1>, vector<9x2xi32>
    %cst_45 = arith.constant dense<0> : vector<2xi32>
    %226 = vector.multi_reduction <add>, %225, %cst_45 [0] : vector<9x2xi32> to vector<2xi32>
    %227 = vector.shape_cast %226 : vector<2xi32> to vector<1x2xi32>
    %228 = vector.broadcast %227 : vector<1x2xi32> to vector<8x2xi32>
    %229 = arith.cmpi eq, %6, %228 : vector<8x2xi32>
    %230 = arith.extui %229 : vector<8x2xi1> to vector<8x2xi32>
    %231 = arith.sitofp %230 : vector<8x2xi32> to vector<8x2xf32>
    %232 = vector.broadcast %5 : vector<8x1xf32> to vector<8x2xf32>
    %233 = arith.mulf %232, %231 : vector<8x2xf32>
    %cst_46 = arith.constant dense<0.000000e+00> : vector<2xf32>
    %234 = vector.multi_reduction <add>, %233, %cst_46 [0] : vector<8x2xf32> to vector<2xf32>
    %235 = vector.shape_cast %234 : vector<2xf32> to vector<1x2xf32>
    %236 = arith.addf %217, %235 : vector<1x2xf32>
    %237 = arith.subf %190, %236 : vector<1x2xf32>
    %c0_47 = arith.constant 0 : index
    %c0_48 = arith.constant 0 : index
    %238 = vector.load %arg7[%c0_47, %c0_48] : memref<1x2xf32, #tpu.memory_space<vmem>>, vector<1x2xf32>
    tpu.vector_store %arg7[%c0_47, %c0_48], %237 {strides = array<i32>} : memref<1x2xf32, #tpu.memory_space<vmem>>, vector<1x2xf32>,
    return
  }
  func.func @transform_0(%arg0: i32) -> (i32, i32, i32) {
    %c0_i32 = arith.constant 0 : i32
    %c0_i32_0 = arith.constant 0 : i32
    %c0_i32_1 = arith.constant 0 : i32
    return %c0_i32, %c0_i32_0, %arg0 : i32, i32, i32
  }
  func.func @transform_1(%arg0: i32) -> (i32, i32) {
    %c0_i32 = arith.constant 0 : i32
    %c0_i32_0 = arith.constant 0 : i32
    return %c0_i32, %arg0 : i32, i32
  }
  func.func @transform_2(%arg0: i32) -> (i32, i32) {
    %c0_i32 = arith.constant 0 : i32
    %c0_i32_0 = arith.constant 0 : i32
    return %c0_i32, %arg0 : i32, i32
  }
  func.func @transform_3(%arg0: i32) -> (i32, i32, i32) {
    %c0_i32 = arith.constant 0 : i32
    %c0_i32_0 = arith.constant 0 : i32
    %c0_i32_1 = arith.constant 0 : i32
    %c0_i32_2 = arith.constant 0 : i32
    return %c0_i32, %c0_i32_0, %c0_i32_1 : i32, i32, i32
  }
  func.func @transform_4(%arg0: i32) -> (i32, i32) {
    %c0_i32 = arith.constant 0 : i32
    %c0_i32_0 = arith.constant 0 : i32
    %c0_i32_1 = arith.constant 0 : i32
    return %c0_i32, %c0_i32_0 : i32, i32
  }
  func.func @transform_5(%arg0: i32) -> (i32, i32) {
    %c0_i32 = arith.constant 0 : i32
    %c0_i32_0 = arith.constant 0 : i32
    %c0_i32_1 = arith.constant 0 : i32
    return %c0_i32, %c0_i32_0 : i32, i32
  }
  func.func @transform_6(%arg0: i32) -> (i32, i32) {
    %c0_i32 = arith.constant 0 : i32
    %c0_i32_0 = arith.constant 0 : i32
    return %c0_i32, %arg0 : i32, i32
  }
}

</mosaic_0001>

<llo_original>
// kernel: tpu_custom_call.1
$region0: #{tpu_custom_call.1}
  #allocation0 [shape = 'u32[]', space=smem, size = 0x4, offset = 0x4, fixed_abs, tag = 'smem constant byte address 0x4 - core index']
  #allocation1 [shape = 'u32[144,128]{1,0:T(1,128)}', space=vmem, size = 0x12000, scoped, tag = 'internal scratch']
  %s0 = inlined_call_operand.vmem [shape: f32[8,8,2], index: 0, kind: input, shape index: {}]
  %s1 = inlined_call_operand.vmem [shape: f32[8,2], index: 1, kind: input, shape index: {}]
  %s2 = inlined_call_operand.vmem [shape: s32[9,2], index: 2, kind: input, shape index: {}]
  %s3 = inlined_call_operand.vmem [shape: f32[8,8,1], index: 3, kind: input, shape index: {}]
  %s4 = inlined_call_operand.vmem [shape: f32[64,1], index: 4, kind: input, shape index: {}]
  %s5 = inlined_call_operand.vmem [shape: f32[8,1], index: 5, kind: input, shape index: {}]
  %s6 = inlined_call_operand.hbm [shape: f32[1,2], index: 6, kind: output, shape index: {}]
  %s7 = sld [smem:[#allocation0]]
  $region34: #{tpu_custom_call.1} parent=0
    _
  %s9 = ssub.s32 1, %s7
  %s10 = scalar_select 0, %s9, %s7
  $region1: #{tpu_custom_call.1} parent=0
    #allocation2 [shape = 'u8[512]{0}', space=vmem, size = 0x400, scoped, tag = 'output window, operand 0, single buffered']
    #allocation3 [shape = 's32[1]{0}', space=sflag, size = 0x4, scoped, tag = 'scoped memory for tpu_custom_call.1']
    %11 = vsyncpa [#allocation3], 0
    // Predicated region
    $region2: #{tpu_custom_call.1} parent=1 // pred_check
      _
    $region3: #{tpu_custom_call.1} parent=1 // pred_check_branch
      %13 = sbr.rel (0) target = $region5
    $region4: #{tpu_custom_call.1} parent=1 // pred_region
      _
    $region5: #{tpu_custom_call.1} parent=1 // pred_fallthru
      _
    // Predicated region
    $region6: #{tpu_custom_call.1} parent=1 // pred_check
      _
    $region7: #{tpu_custom_call.1} parent=1 // pred_check_branch
      %15 = sbr.rel (0) target = $region9
    $region8: #{tpu_custom_call.1} parent=1 // pred_region
      _
    $region9: #{tpu_custom_call.1} parent=1 // pred_fallthru
      _
    // Predicated region
    $region10: #{tpu_custom_call.1} parent=1 // pred_check
      _
    $region11: #{tpu_custom_call.1} parent=1 // pred_check_branch
      %17 = sbr.rel (0) target = $region13
    $region12: #{tpu_custom_call.1} parent=1 // pred_region
      _
    $region13: #{tpu_custom_call.1} parent=1 // pred_fallthru
      _
    // Predicated region
    $region14: #{tpu_custom_call.1} parent=1 // pred_check
      _
    $region15: #{tpu_custom_call.1} parent=1 // pred_check_branch
      %19 = sbr.rel (0) target = $region17
    $region16: #{tpu_custom_call.1} parent=1 // pred_region
      _
    $region17: #{tpu_custom_call.1} parent=1 // pred_fallthru
      _
    // Predicated region
    $region18: #{tpu_custom_call.1} parent=1 // pred_check
      _
    $region19: #{tpu_custom_call.1} parent=1 // pred_check_branch
      %21 = sbr.rel (0) target = $region21
    $region20: #{tpu_custom_call.1} parent=1 // pred_region
      _
    $region21: #{tpu_custom_call.1} parent=1 // pred_fallthru
      _
    // Predicated region
    $region22: #{tpu_custom_call.1} parent=1 // pred_check
      _
    $region23: #{tpu_custom_call.1} parent=1 // pred_check_branch
      %23 = sbr.rel (0) target = $region25
    $region24: #{tpu_custom_call.1} parent=1 // pred_region
      _
    $region25: #{tpu_custom_call.1} parent=1 // pred_fallthru
      _
    %v24 = vld [vmem:[%s0] sm:$0xff]
    %v25 = vld [vmem:[%s0 + $0x8] sm:$0xff]
    %v26 = vld [vmem:[%s0 + $0x10] sm:$0xff]
    %v27 = vld [vmem:[%s0 + $0x18] sm:$0xff]
    %v28 = vld [vmem:[%s0 + $0x20] sm:$0xff]
    %v29 = vld [vmem:[%s0 + $0x28] sm:$0xff]
    %v30 = vld [vmem:[%s0 + $0x30] sm:$0xff]
    %v31 = vld [vmem:[%s0 + $0x38] sm:$0xff]
    %v32 = vld [vmem:[%s1] sm:$0xff]
    %v33 = vld [vmem:[%s2] sm:$0xff]
    %v34 = vld [vmem:[%s2 + $0x8] sm:$0x1]
    %v35 = vld [vmem:[%s3] sm:$0xff]
    %v36 = vld [vmem:[%s3 + $0x8] sm:$0xff]
    %v37 = vld [vmem:[%s3 + $0x10] sm:$0xff]
    %v38 = vld [vmem:[%s3 + $0x18] sm:$0xff]
    %v39 = vld [vmem:[%s3 + $0x20] sm:$0xff]
    %v40 = vld [vmem:[%s3 + $0x28] sm:$0xff]
    %v41 = vld [vmem:[%s3 + $0x30] sm:$0xff]
    %v42 = vld [vmem:[%s3 + $0x38] sm:$0xff]
    %v43 = vld [vmem:[%s4] sm:$0xff]
    %v44 = vld [vmem:[%s4 + $0x8] sm:$0xff]
    %v45 = vld [vmem:[%s4 + $0x10] sm:$0xff]
    %v46 = vld [vmem:[%s4 + $0x18] sm:$0xff]
    %v47 = vld [vmem:[%s4 + $0x20] sm:$0xff]
    %v48 = vld [vmem:[%s4 + $0x28] sm:$0xff]
    %v49 = vld [vmem:[%s4 + $0x30] sm:$0xff]
    %v50 = vld [vmem:[%s4 + $0x38] sm:$0xff]
    %v51 = vld [vmem:[%s5] sm:$0xff]
    %v52 = vlaneseq
    %v53 = vshrl.u32 %v52, 7
    %vm54 = vcmp.eq.s32.totalorder %v53, 0
    %v55 = vsel %vm54, 0.0, -10000.0
    %v57 = vlaneseq
    %v58 = vshrl.u32 %v57, 7
    %v59 = vsub.s32 0, %v58
    %v60 = vrot.slane %v55, %v59
    %v61 = vlaneseq
    %v62 = vshrl.u32 %v61, 7
    %v63 = vsub.s32 1, %v62
    %v64 = vrot.slane %v55, %v63
    %v65 = vlaneseq
    %v66 = vshrl.u32 %v65, 7
    %v67 = vsub.s32 2, %v66
    %v68 = vrot.slane %v55, %v67
    %v69 = vlaneseq
    %v70 = vshrl.u32 %v69, 7
    %v71 = vsub.s32 3, %v70
    %v72 = vrot.slane %v55, %v71
    %v73 = vlaneseq
    %v74 = vshrl.u32 %v73, 7
    %v75 = vsub.s32 4, %v74
    %v76 = vrot.slane %v55, %v75
    %v77 = vlaneseq
    %v78 = vshrl.u32 %v77, 7
    %v79 = vsub.s32 5, %v78
    %v80 = vrot.slane %v55, %v79
    %v81 = vlaneseq
    %v82 = vshrl.u32 %v81, 7
    %v83 = vsub.s32 6, %v82
    %v84 = vrot.slane %v55, %v83
    %v85 = vlaneseq
    %v86 = vshrl.u32 %v85, 7
    %v87 = vsub.s32 7, %v86
    %v88 = vrot.slane %v55, %v87
    %98 = vset.pattern.permute.xlu0 0
    %99 = vperm.xlu0 %98, %v35
    %v100 = vpop.permute.xlu0 %99
    %103 = vset.pattern.permute.xlu0 0
    %104 = vperm.xlu0 %103, %v36
    %v105 = vpop.permute.xlu0 %104
    %108 = vset.pattern.permute.xlu0 0
    %109 = vperm.xlu0 %108, %v37
    %v110 = vpop.permute.xlu0 %109
    %113 = vset.pattern.permute.xlu0 0
    %114 = vperm.xlu0 %113, %v38
    %v115 = vpop.permute.xlu0 %114
    %118 = vset.pattern.permute.xlu0 0
    %119 = vperm.xlu0 %118, %v39
    %v120 = vpop.permute.xlu0 %119
    %123 = vset.pattern.permute.xlu0 0
    %124 = vperm.xlu0 %123, %v40
    %v125 = vpop.permute.xlu0 %124
    %128 = vset.pattern.permute.xlu0 0
    %129 = vperm.xlu0 %128, %v41
    %v130 = vpop.permute.xlu0 %129
    %133 = vset.pattern.permute.xlu0 0
    %134 = vperm.xlu0 %133, %v42
    %v135 = vpop.permute.xlu0 %134
    %v137 = vadd.f32 %v60, %v100
    %v138 = vadd.f32 %v64, %v105
    %v139 = vadd.f32 %v68, %v110
    %v140 = vadd.f32 %v72, %v115
    %v141 = vadd.f32 %v76, %v120
    %v142 = vadd.f32 %v80, %v125
    %v143 = vadd.f32 %v84, %v130
    %v144 = vadd.f32 %v88, %v135
    %v145 = vmax.f32 %v137, %v141
    %v146 = vmax.f32 %v138, %v142
    %v147 = vmax.f32 %v139, %v143
    %v148 = vmax.f32 %v140, %v144
    %v149 = vmax.f32 %v145, %v146
    %v150 = vmax.f32 %v147, %v148
    %v151 = vmax.f32 %v149, %v150
    %v152 = vsub.f32 %v137, %v151
    %v153 = vsub.f32 %v138, %v151
    %v154 = vsub.f32 %v139, %v151
    %v155 = vsub.f32 %v140, %v151
    %v156 = vsub.f32 %v141, %v151
    %v157 = vsub.f32 %v142, %v151
    %v158 = vsub.f32 %v143, %v151
    %v159 = vsub.f32 %v144, %v151
    %v160 = vmul.f32 %v152, 1.442695
    %v161 = vpow.pop %v160
    %v162 = vmul.f32 %v153, 1.442695
    %v163 = vpow.pop %v162
    %v164 = vmul.f32 %v154, 1.442695
    %v165 = vpow.pop %v164
    %v166 = vmul.f32 %v155, 1.442695
    %v167 = vpow.pop %v166
    %v168 = vmul.f32 %v156, 1.442695
    %v169 = vpow.pop %v168
    %v170 = vmul.f32 %v157, 1.442695
    %v171 = vpow.pop %v170
    %v172 = vmul.f32 %v158, 1.442695
    %v173 = vpow.pop %v172
    %v174 = vmul.f32 %v159, 1.442695
    %v175 = vpow.pop %v174
    %v176 = vadd.f32 %v161, %v163
    %v177 = vadd.f32 %v176, %v165
    %v178 = vadd.f32 %v177, %v167
    %v179 = vadd.f32 %v178, %v169
    %v180 = vadd.f32 %v179, %v171
    %v181 = vadd.f32 %v180, %v173
    %v182 = vadd.f32 %v181, %v175
    %v183 = vlog2.pop %v182
    %v184 = vmul.f32 %v183, 0.6931472
    %v185 = vadd.f32 %v151, %v184
    %v186 = vadd.f32 %v185, %v24
    %vm187 = vcmp.gt.f32.partialorder %v32, 0.0
    %v188 = vsel %vm187, 1, 0
    %v189 = vlaneseq
    %v190 = vshrl.u32 %v189, 7
    %v191 = vsub.s32 0, %v190
    %v192 = vrot.slane %v188, %v191
    %vm193 = vcmp.eq.s32.totalorder %v192, 1
    %v194 = vsel %vm193, %v186, %v55
    %v196 = vcombine.high %v194, %v194
    %v198 = vunpack.c.l.s4 1966171168
    %v199 = vunpack.c.0.s8 %v198
    %v200 = vlaneseq
    %v201 = vshrl.u32 %v200, 7
    %v202 = vsub.s32 %v199, %v201
    %v203 = vrot.slane %v194, %v202
    %v205 = vunpack.c.l.s4 1966171168
    %v206 = vunpack.c.0.s8 %v205
    %v207 = vlaneseq
    %v208 = vshrl.u32 %v207, 7
    %v209 = vsub.s32 %v206, %v208
    %v210 = vrot.slane %v196, %v209
    %v211 = vcombine.high %v203, %v203
    %v212 = vcombine.high %v210, %v210
    %v214 = vunpack.c.l.s4 1966171168
    %v215 = vunpack.c.0.s8 %v214
    %v216 = vlaneseq
    %v217 = vshrl.u32 %v216, 7
    %v218 = vsub.s32 %v215, %v217
    %v219 = vrot.slane %v203, %v218
    %v221 = vunpack.c.l.s4 1966171168
    %v222 = vunpack.c.0.s8 %v221
    %v223 = vlaneseq
    %v224 = vshrl.u32 %v223, 7
    %v225 = vsub.s32 %v222, %v224
    %v226 = vrot.slane %v210, %v225
    %v228 = vunpack.c.l.s4 1966171168
    %v229 = vunpack.c.0.s8 %v228
    %v230 = vlaneseq
    %v231 = vshrl.u32 %v230, 7
    %v232 = vsub.s32 %v229, %v231
    %v233 = vrot.slane %v211, %v232
    %v235 = vunpack.c.l.s4 1966171168
    %v236 = vunpack.c.0.s8 %v235
    %v237 = vlaneseq
    %v238 = vshrl.u32 %v237, 7
    %v239 = vsub.s32 %v236, %v238
    %v240 = vrot.slane %v212, %v239
    %v241 = vcombine.high %v219, %v219
    %v242 = vcombine.high %v226, %v226
    %v243 = vcombine.high %v233, %v233
    %v244 = vcombine.high %v240, %v240
    %v245 = vlaneseq
    %v246 = vshrl.u32 %v245, 7
    %v247 = vsub.s32 0, %v246
    %v248 = vrot.slane %v219, %v247
    %v249 = vlaneseq
    %v250 = vshrl.u32 %v249, 7
    %v251 = vsub.s32 0, %v250
    %v252 = vrot.slane %v233, %v251
    %v253 = vlaneseq
    %v254 = vshrl.u32 %v253, 7
    %v255 = vsub.s32 0, %v254
    %v256 = vrot.slane %v241, %v255
    %v257 = vlaneseq
    %v258 = vshrl.u32 %v257, 7
    %v259 = vsub.s32 0, %v258
    %v260 = vrot.slane %v243, %v259
    %v261 = vlaneseq
    %v262 = vshrl.u32 %v261, 7
    %v263 = vsub.s32 0, %v262
    %v264 = vrot.slane %v226, %v263
    %v265 = vlaneseq
    %v266 = vshrl.u32 %v265, 7
    %v267 = vsub.s32 0, %v266
    %v268 = vrot.slane %v240, %v267
    %v269 = vlaneseq
    %v270 = vshrl.u32 %v269, 7
    %v271 = vsub.s32 0, %v270
    %v272 = vrot.slane %v242, %v271
    %v273 = vlaneseq
    %v274 = vshrl.u32 %v273, 7
    %v275 = vsub.s32 0, %v274
    %v276 = vrot.slane %v244, %v275
    %v285 = vadd.f32 %v248, %v100
    %v286 = vadd.f32 %v252, %v105
    %v287 = vadd.f32 %v256, %v110
    %v288 = vadd.f32 %v260, %v115
    %v289 = vadd.f32 %v264, %v120
    %v290 = vadd.f32 %v268, %v125
    %v291 = vadd.f32 %v272, %v130
    %v292 = vadd.f32 %v276, %v135
    %vm293 = vcmask 15360
    %v294 = vsel %vm293, %v285, -inf
    %v295 = vsel %vm293, %v286, -inf
    %v296 = vsel %vm293, %v287, -inf
    %v297 = vsel %vm293, %v288, -inf
    %v298 = vsel %vm293, %v289, -inf
    %v299 = vmax.f32 %v294, %v298
    %v300 = vsel %vm293, %v290, -inf
    %v301 = vmax.f32 %v295, %v300
    %v302 = vsel %vm293, %v291, -inf
    %v303 = vmax.f32 %v296, %v302
    %v304 = vsel %vm293, %v292, -inf
    %v305 = vmax.f32 %v297, %v304
    %v306 = vmax.f32 %v299, %v301
    %v307 = vmax.f32 %v303, %v305
    %v308 = vmax.f32 %v306, %v307
    %v309 = vsub.f32 %v285, %v308
    %v310 = vsub.f32 %v286, %v308
    %v311 = vsub.f32 %v287, %v308
    %v312 = vsub.f32 %v288, %v308
    %v313 = vsub.f32 %v289, %v308
    %v314 = vsub.f32 %v290, %v308
    %v315 = vsub.f32 %v291, %v308
    %v316 = vsub.f32 %v292, %v308
    %v317 = vmul.f32 %v309, 1.442695
    %v318 = vpow.pop %v317
    %v319 = vmul.f32 %v310, 1.442695
    %v320 = vpow.pop %v319
    %v321 = vmul.f32 %v311, 1.442695
    %v322 = vpow.pop %v321
    %v323 = vmul.f32 %v312, 1.442695
    %v324 = vpow.pop %v323
    %v325 = vmul.f32 %v313, 1.442695
    %v326 = vpow.pop %v325
    %v327 = vmul.f32 %v314, 1.442695
    %v328 = vpow.pop %v327
    %v329 = vmul.f32 %v315, 1.442695
    %v330 = vpow.pop %v329
    %v331 = vmul.f32 %v316, 1.442695
    %v332 = vpow.pop %v331
    %v333 = vsel %vm293, %v318, 0.0
    %v334 = vsel %vm293, %v320, 0.0
    %v335 = vadd.f32 %v333, %v334
    %v336 = vsel %vm293, %v322, 0.0
    %v337 = vadd.f32 %v335, %v336
    %v338 = vsel %vm293, %v324, 0.0
    %v339 = vadd.f32 %v337, %v338
    %v340 = vsel %vm293, %v326, 0.0
    %v341 = vadd.f32 %v339, %v340
    %v342 = vsel %vm293, %v328, 0.0
    %v343 = vadd.f32 %v341, %v342
    %v344 = vsel %vm293, %v330, 0.0
    %v345 = vadd.f32 %v343, %v344
    %v346 = vsel %vm293, %v332, 0.0
    %v347 = vadd.f32 %v345, %v346
    %v348 = vlog2.pop %v347
    %v349 = vmul.f32 %v348, 0.6931472
    %v350 = vadd.f32 %v308, %v349
    %v351 = vadd.f32 %v350, %v25
    %v352 = vlaneseq
    %v353 = vshrl.u32 %v352, 7
    %v354 = vsub.s32 1, %v353
    %v355 = vrot.slane %v188, %v354
    %vm356 = vcmp.eq.s32.totalorder %v355, 1
    %v357 = vsel %vm356, %v351, %v194
    %v359 = vcombine.high %v357, %v357
    %v361 = vunpack.c.l.s4 1966171168
    %v362 = vunpack.c.0.s8 %v361
    %v363 = vlaneseq
    %v364 = vshrl.u32 %v363, 7
    %v365 = vsub.s32 %v362, %v364
    %v366 = vrot.slane %v357, %v365
    %v368 = vunpack.c.l.s4 1966171168
    %v369 = vunpack.c.0.s8 %v368
    %v370 = vlaneseq
    %v371 = vshrl.u32 %v370, 7
    %v372 = vsub.s32 %v369, %v371
    %v373 = vrot.slane %v359, %v372
    %v374 = vcombine.high %v366, %v366
    %v375 = vcombine.high %v373, %v373
    %v377 = vunpack.c.l.s4 1966171168
    %v378 = vunpack.c.0.s8 %v377
    %v379 = vlaneseq
    %v380 = vshrl.u32 %v379, 7
    %v381 = vsub.s32 %v378, %v380
    %v382 = vrot.slane %v366, %v381
    %v384 = vunpack.c.l.s4 1966171168
    %v385 = vunpack.c.0.s8 %v384
    %v386 = vlaneseq
    %v387 = vshrl.u32 %v386, 7
    %v388 = vsub.s32 %v385, %v387
    %v389 = vrot.slane %v373, %v388
    %v391 = vunpack.c.l.s4 1966171168
    %v392 = vunpack.c.0.s8 %v391
    %v393 = vlaneseq
    %v394 = vshrl.u32 %v393, 7
    %v395 = vsub.s32 %v392, %v394
    %v396 = vrot.slane %v374, %v395
    %v398 = vunpack.c.l.s4 1966171168
    %v399 = vunpack.c.0.s8 %v398
    %v400 = vlaneseq
    %v401 = vshrl.u32 %v400, 7
    %v402 = vsub.s32 %v399, %v401
    %v403 = vrot.slane %v375, %v402
    %v404 = vcombine.high %v382, %v382
    %v405 = vcombine.high %v389, %v389
    %v406 = vcombine.high %v396, %v396
    %v407 = vcombine.high %v403, %v403
    %v408 = vlaneseq
    %v409 = vshrl.u32 %v408, 7
    %v410 = vsub.s32 0, %v409
    %v411 = vrot.slane %v382, %v410
    %v412 = vlaneseq
    %v413 = vshrl.u32 %v412, 7
    %v414 = vsub.s32 0, %v413
    %v415 = vrot.slane %v396, %v414
    %v416 = vlaneseq
    %v417 = vshrl.u32 %v416, 7
    %v418 = vsub.s32 0, %v417
    %v419 = vrot.slane %v404, %v418
    %v420 = vlaneseq
    %v421 = vshrl.u32 %v420, 7
    %v422 = vsub.s32 0, %v421
    %v423 = vrot.slane %v406, %v422
    %v424 = vlaneseq
    %v425 = vshrl.u32 %v424, 7
    %v426 = vsub.s32 0, %v425
    %v427 = vrot.slane %v389, %v426
    %v428 = vlaneseq
    %v429 = vshrl.u32 %v428, 7
    %v430 = vsub.s32 0, %v429
    %v431 = vrot.slane %v403, %v430
    %v432 = vlaneseq
    %v433 = vshrl.u32 %v432, 7
    %v434 = vsub.s32 0, %v433
    %v435 = vrot.slane %v405, %v434
    %v436 = vlaneseq
    %v437 = vshrl.u32 %v436, 7
    %v438 = vsub.s32 0, %v437
    %v439 = vrot.slane %v407, %v438
    %v448 = vadd.f32 %v411, %v100
    %v449 = vadd.f32 %v415, %v105
    %v450 = vadd.f32 %v419, %v110
    %v451 = vadd.f32 %v423, %v115
    %v452 = vadd.f32 %v427, %v120
    %v453 = vadd.f32 %v431, %v125
    %v454 = vadd.f32 %v435, %v130
    %v455 = vadd.f32 %v439, %v135
    %v456 = vsel %vm293, %v448, -inf
    %v457 = vsel %vm293, %v449, -inf
    %v458 = vsel %vm293, %v450, -inf
    %v459 = vsel %vm293, %v451, -inf
    %v460 = vsel %vm293, %v452, -inf
    %v461 = vmax.f32 %v456, %v460
    %v462 = vsel %vm293, %v453, -inf
    %v463 = vmax.f32 %v457, %v462
    %v464 = vsel %vm293, %v454, -inf
    %v465 = vmax.f32 %v458, %v464
    %v466 = vsel %vm293, %v455, -inf
    %v467 = vmax.f32 %v459, %v466
    %v468 = vmax.f32 %v461, %v463
    %v469 = vmax.f32 %v465, %v467
    %v470 = vmax.f32 %v468, %v469
    %v471 = vsub.f32 %v448, %v470
    %v472 = vsub.f32 %v449, %v470
    %v473 = vsub.f32 %v450, %v470
    %v474 = vsub.f32 %v451, %v470
    %v475 = vsub.f32 %v452, %v470
    %v476 = vsub.f32 %v453, %v470
    %v477 = vsub.f32 %v454, %v470
    %v478 = vsub.f32 %v455, %v470
    %v479 = vmul.f32 %v471, 1.442695
    %v480 = vpow.pop %v479
    %v481 = vmul.f32 %v472, 1.442695
    %v482 = vpow.pop %v481
    %v483 = vmul.f32 %v473, 1.442695
    %v484 = vpow.pop %v483
    %v485 = vmul.f32 %v474, 1.442695
    %v486 = vpow.pop %v485
    %v487 = vmul.f32 %v475, 1.442695
    %v488 = vpow.pop %v487
    %v489 = vmul.f32 %v476, 1.442695
    %v490 = vpow.pop %v489
    %v491 = vmul.f32 %v477, 1.442695
    %v492 = vpow.pop %v491
    %v493 = vmul.f32 %v478, 1.442695
    %v494 = vpow.pop %v493
    %v495 = vsel %vm293, %v480, 0.0
    %v496 = vsel %vm293, %v482, 0.0
    %v497 = vadd.f32 %v495, %v496
    %v498 = vsel %vm293, %v484, 0.0
    %v499 = vadd.f32 %v497, %v498
    %v500 = vsel %vm293, %v486, 0.0
    %v501 = vadd.f32 %v499, %v500
    %v502 = vsel %vm293, %v488, 0.0
    %v503 = vadd.f32 %v501, %v502
    %v504 = vsel %vm293, %v490, 0.0
    %v505 = vadd.f32 %v503, %v504
    %v506 = vsel %vm293, %v492, 0.0
    %v507 = vadd.f32 %v505, %v506
    %v508 = vsel %vm293, %v494, 0.0
    %v509 = vadd.f32 %v507, %v508
    %v510 = vlog2.pop %v509
    %v511 = vmul.f32 %v510, 0.6931472
    %v512 = vadd.f32 %v470, %v511
    %v513 = vadd.f32 %v512, %v26
    %v514 = vlaneseq
    %v515 = vshrl.u32 %v514, 7
    %v516 = vsub.s32 2, %v515
    %v517 = vrot.slane %v188, %v516
    %vm518 = vcmp.eq.s32.totalorder %v517, 1
    %v519 = vsel %vm518, %v513, %v357
    %v521 = vcombine.high %v519, %v519
    %v523 = vunpack.c.l.s4 1966171168
    %v524 = vunpack.c.0.s8 %v523
    %v525 = vlaneseq
    %v526 = vshrl.u32 %v525, 7
    %v527 = vsub.s32 %v524, %v526
    %v528 = vrot.slane %v519, %v527
    %v530 = vunpack.c.l.s4 1966171168
    %v531 = vunpack.c.0.s8 %v530
    %v532 = vlaneseq
    %v533 = vshrl.u32 %v532, 7
    %v534 = vsub.s32 %v531, %v533
    %v535 = vrot.slane %v521, %v534
    %v536 = vcombine.high %v528, %v528
    %v537 = vcombine.high %v535, %v535
    %v539 = vunpack.c.l.s4 1966171168
    %v540 = vunpack.c.0.s8 %v539
    %v541 = vlaneseq
    %v542 = vshrl.u32 %v541, 7
    %v543 = vsub.s32 %v540, %v542
    %v544 = vrot.slane %v528, %v543
    %v546 = vunpack.c.l.s4 1966171168
    %v547 = vunpack.c.0.s8 %v546
    %v548 = vlaneseq
    %v549 = vshrl.u32 %v548, 7
    %v550 = vsub.s32 %v547, %v549
    %v551 = vrot.slane %v535, %v550
    %v553 = vunpack.c.l.s4 1966171168
    %v554 = vunpack.c.0.s8 %v553
    %v555 = vlaneseq
    %v556 = vshrl.u32 %v555, 7
    %v557 = vsub.s32 %v554, %v556
    %v558 = vrot.slane %v536, %v557
    %v560 = vunpack.c.l.s4 1966171168
    %v561 = vunpack.c.0.s8 %v560
    %v562 = vlaneseq
    %v563 = vshrl.u32 %v562, 7
    %v564 = vsub.s32 %v561, %v563
    %v565 = vrot.slane %v537, %v564
    %v566 = vcombine.high %v544, %v544
    %v567 = vcombine.high %v551, %v551
    %v568 = vcombine.high %v558, %v558
    %v569 = vcombine.high %v565, %v565
    %v570 = vlaneseq
    %v571 = vshrl.u32 %v570, 7
    %v572 = vsub.s32 0, %v571
    %v573 = vrot.slane %v544, %v572
    %v574 = vlaneseq
    %v575 = vshrl.u32 %v574, 7
    %v576 = vsub.s32 0, %v575
    %v577 = vrot.slane %v558, %v576
    %v578 = vlaneseq
    %v579 = vshrl.u32 %v578, 7
    %v580 = vsub.s32 0, %v579
    %v581 = vrot.slane %v566, %v580
    %v582 = vlaneseq
    %v583 = vshrl.u32 %v582, 7
    %v584 = vsub.s32 0, %v583
    %v585 = vrot.slane %v568, %v584
    %v586 = vlaneseq
    %v587 = vshrl.u32 %v586, 7
    %v588 = vsub.s32 0, %v587
    %v589 = vrot.slane %v551, %v588
    %v590 = vlaneseq
    %v591 = vshrl.u32 %v590, 7
    %v592 = vsub.s32 0, %v591
    %v593 = vrot.slane %v565, %v592
    %v594 = vlaneseq
    %v595 = vshrl.u32 %v594, 7
    %v596 = vsub.s32 0, %v595
    %v597 = vrot.slane %v567, %v596
    %v598 = vlaneseq
    %v599 = vshrl.u32 %v598, 7
    %v600 = vsub.s32 0, %v599
    %v601 = vrot.slane %v569, %v600
    %v610 = vadd.f32 %v573, %v100
    %v611 = vadd.f32 %v577, %v105
    %v612 = vadd.f32 %v581, %v110
    %v613 = vadd.f32 %v585, %v115
    %v614 = vadd.f32 %v589, %v120
    %v615 = vadd.f32 %v593, %v125
    %v616 = vadd.f32 %v597, %v130
    %v617 = vadd.f32 %v601, %v135
    %v618 = vsel %vm293, %v610, -inf
    %v619 = vsel %vm293, %v611, -inf
    %v620 = vsel %vm293, %v612, -inf
    %v621 = vsel %vm293, %v613, -inf
    %v622 = vsel %vm293, %v614, -inf
    %v623 = vmax.f32 %v618, %v622
    %v624 = vsel %vm293, %v615, -inf
    %v625 = vmax.f32 %v619, %v624
    %v626 = vsel %vm293, %v616, -inf
    %v627 = vmax.f32 %v620, %v626
    %v628 = vsel %vm293, %v617, -inf
    %v629 = vmax.f32 %v621, %v628
    %v630 = vmax.f32 %v623, %v625
    %v631 = vmax.f32 %v627, %v629
    %v632 = vmax.f32 %v630, %v631
    %v633 = vsub.f32 %v610, %v632
    %v634 = vsub.f32 %v611, %v632
    %v635 = vsub.f32 %v612, %v632
    %v636 = vsub.f32 %v613, %v632
    %v637 = vsub.f32 %v614, %v632
    %v638 = vsub.f32 %v615, %v632
    %v639 = vsub.f32 %v616, %v632
    %v640 = vsub.f32 %v617, %v632
    %v641 = vmul.f32 %v633, 1.442695
    %v642 = vpow.pop %v641
    %v643 = vmul.f32 %v634, 1.442695
    %v644 = vpow.pop %v643
    %v645 = vmul.f32 %v635, 1.442695
    %v646 = vpow.pop %v645
    %v647 = vmul.f32 %v636, 1.442695
    %v648 = vpow.pop %v647
    %v649 = vmul.f32 %v637, 1.442695
    %v650 = vpow.pop %v649
    %v651 = vmul.f32 %v638, 1.442695
    %v652 = vpow.pop %v651
    %v653 = vmul.f32 %v639, 1.442695
    %v654 = vpow.pop %v653
    %v655 = vmul.f32 %v640, 1.442695
    %v656 = vpow.pop %v655
    %v657 = vsel %vm293, %v642, 0.0
    %v658 = vsel %vm293, %v644, 0.0
    %v659 = vadd.f32 %v657, %v658
    %v660 = vsel %vm293, %v646, 0.0
    %v661 = vadd.f32 %v659, %v660
    %v662 = vsel %vm293, %v648, 0.0
    %v663 = vadd.f32 %v661, %v662
    %v664 = vsel %vm293, %v650, 0.0
    %v665 = vadd.f32 %v663, %v664
    %v666 = vsel %vm293, %v652, 0.0
    %v667 = vadd.f32 %v665, %v666
    %v668 = vsel %vm293, %v654, 0.0
    %v669 = vadd.f32 %v667, %v668
    %v670 = vsel %vm293, %v656, 0.0
    %v671 = vadd.f32 %v669, %v670
    %v672 = vlog2.pop %v671
    %v673 = vmul.f32 %v672, 0.6931472
    %v674 = vadd.f32 %v632, %v673
    %v675 = vadd.f32 %v674, %v27
    %v676 = vlaneseq
    %v677 = vshrl.u32 %v676, 7
    %v678 = vsub.s32 3, %v677
    %v679 = vrot.slane %v188, %v678
    %vm680 = vcmp.eq.s32.totalorder %v679, 1
    %v681 = vsel %vm680, %v675, %v519
    %v683 = vcombine.high %v681, %v681
    %v685 = vunpack.c.l.s4 1966171168
    %v686 = vunpack.c.0.s8 %v685
    %v687 = vlaneseq
    %v688 = vshrl.u32 %v687, 7
    %v689 = vsub.s32 %v686, %v688
    %v690 = vrot.slane %v681, %v689
    %v692 = vunpack.c.l.s4 1966171168
    %v693 = vunpack.c.0.s8 %v692
    %v694 = vlaneseq
    %v695 = vshrl.u32 %v694, 7
    %v696 = vsub.s32 %v693, %v695
    %v697 = vrot.slane %v683, %v696
    %v698 = vcombine.high %v690, %v690
    %v699 = vcombine.high %v697, %v697
    %v701 = vunpack.c.l.s4 1966171168
    %v702 = vunpack.c.0.s8 %v701
    %v703 = vlaneseq
    %v704 = vshrl.u32 %v703, 7
    %v705 = vsub.s32 %v702, %v704
    %v706 = vrot.slane %v690, %v705
    %v708 = vunpack.c.l.s4 1966171168
    %v709 = vunpack.c.0.s8 %v708
    %v710 = vlaneseq
    %v711 = vshrl.u32 %v710, 7
    %v712 = vsub.s32 %v709, %v711
    %v713 = vrot.slane %v697, %v712
    %v715 = vunpack.c.l.s4 1966171168
    %v716 = vunpack.c.0.s8 %v715
    %v717 = vlaneseq
    %v718 = vshrl.u32 %v717, 7
    %v719 = vsub.s32 %v716, %v718
    %v720 = vrot.slane %v698, %v719
    %v722 = vunpack.c.l.s4 1966171168
    %v723 = vunpack.c.0.s8 %v722
    %v724 = vlaneseq
    %v725 = vshrl.u32 %v724, 7
    %v726 = vsub.s32 %v723, %v725
    %v727 = vrot.slane %v699, %v726
    %v728 = vcombine.high %v706, %v706
    %v729 = vcombine.high %v713, %v713
    %v730 = vcombine.high %v720, %v720
    %v731 = vcombine.high %v727, %v727
    %v732 = vlaneseq
    %v733 = vshrl.u32 %v732, 7
    %v734 = vsub.s32 0, %v733
    %v735 = vrot.slane %v706, %v734
    %v736 = vlaneseq
    %v737 = vshrl.u32 %v736, 7
    %v738 = vsub.s32 0, %v737
    %v739 = vrot.slane %v720, %v738
    %v740 = vlaneseq
    %v741 = vshrl.u32 %v740, 7
    %v742 = vsub.s32 0, %v741
    %v743 = vrot.slane %v728, %v742
    %v744 = vlaneseq
    %v745 = vshrl.u32 %v744, 7
    %v746 = vsub.s32 0, %v745
    %v747 = vrot.slane %v730, %v746
    %v748 = vlaneseq
    %v749 = vshrl.u32 %v748, 7
    %v750 = vsub.s32 0, %v749
    %v751 = vrot.slane %v713, %v750
    %v752 = vlaneseq
    %v753 = vshrl.u32 %v752, 7
    %v754 = vsub.s32 0, %v753
    %v755 = vrot.slane %v727, %v754
    %v756 = vlaneseq
    %v757 = vshrl.u32 %v756, 7
    %v758 = vsub.s32 0, %v757
    %v759 = vrot.slane %v729, %v758
    %v760 = vlaneseq
    %v761 = vshrl.u32 %v760, 7
    %v762 = vsub.s32 0, %v761
    %v763 = vrot.slane %v731, %v762
    %v772 = vadd.f32 %v735, %v100
    %v773 = vadd.f32 %v739, %v105
    %v774 = vadd.f32 %v743, %v110
    %v775 = vadd.f32 %v747, %v115
    %v776 = vadd.f32 %v751, %v120
    %v777 = vadd.f32 %v755, %v125
    %v778 = vadd.f32 %v759, %v130
    %v779 = vadd.f32 %v763, %v135
    %v780 = vsel %vm293, %v772, -inf
    %v781 = vsel %vm293, %v773, -inf
    %v782 = vsel %vm293, %v774, -inf
    %v783 = vsel %vm293, %v775, -inf
    %v784 = vsel %vm293, %v776, -inf
    %v785 = vmax.f32 %v780, %v784
    %v786 = vsel %vm293, %v777, -inf
    %v787 = vmax.f32 %v781, %v786
    %v788 = vsel %vm293, %v778, -inf
    %v789 = vmax.f32 %v782, %v788
    %v790 = vsel %vm293, %v779, -inf
    %v791 = vmax.f32 %v783, %v790
    %v792 = vmax.f32 %v785, %v787
    %v793 = vmax.f32 %v789, %v791
    %v794 = vmax.f32 %v792, %v793
    %v795 = vsub.f32 %v772, %v794
    %v796 = vsub.f32 %v773, %v794
    %v797 = vsub.f32 %v774, %v794
    %v798 = vsub.f32 %v775, %v794
    %v799 = vsub.f32 %v776, %v794
    %v800 = vsub.f32 %v777, %v794
    %v801 = vsub.f32 %v778, %v794
    %v802 = vsub.f32 %v779, %v794
    %v803 = vmul.f32 %v795, 1.442695
    %v804 = vpow.pop %v803
    %v805 = vmul.f32 %v796, 1.442695
    %v806 = vpow.pop %v805
    %v807 = vmul.f32 %v797, 1.442695
    %v808 = vpow.pop %v807
    %v809 = vmul.f32 %v798, 1.442695
    %v810 = vpow.pop %v809
    %v811 = vmul.f32 %v799, 1.442695
    %v812 = vpow.pop %v811
    %v813 = vmul.f32 %v800, 1.442695
    %v814 = vpow.pop %v813
    %v815 = vmul.f32 %v801, 1.442695
    %v816 = vpow.pop %v815
    %v817 = vmul.f32 %v802, 1.442695
    %v818 = vpow.pop %v817
    %v819 = vsel %vm293, %v804, 0.0
    %v820 = vsel %vm293, %v806, 0.0
    %v821 = vadd.f32 %v819, %v820
    %v822 = vsel %vm293, %v808, 0.0
    %v823 = vadd.f32 %v821, %v822
    %v824 = vsel %vm293, %v810, 0.0
    %v825 = vadd.f32 %v823, %v824
    %v826 = vsel %vm293, %v812, 0.0
    %v827 = vadd.f32 %v825, %v826
    %v828 = vsel %vm293, %v814, 0.0
    %v829 = vadd.f32 %v827, %v828
    %v830 = vsel %vm293, %v816, 0.0
    %v831 = vadd.f32 %v829, %v830
    %v832 = vsel %vm293, %v818, 0.0
    %v833 = vadd.f32 %v831, %v832
    %v834 = vlog2.pop %v833
    %v835 = vmul.f32 %v834, 0.6931472
    %v836 = vadd.f32 %v794, %v835
    %v837 = vadd.f32 %v836, %v28
    %v838 = vlaneseq
    %v839 = vshrl.u32 %v838, 7
    %v840 = vsub.s32 4, %v839
    %v841 = vrot.slane %v188, %v840
    %vm842 = vcmp.eq.s32.totalorder %v841, 1
    %v843 = vsel %vm842, %v837, %v681
    %v845 = vcombine.high %v843, %v843
    %v847 = vunpack.c.l.s4 1966171168
    %v848 = vunpack.c.0.s8 %v847
    %v849 = vlaneseq
    %v850 = vshrl.u32 %v849, 7
    %v851 = vsub.s32 %v848, %v850
    %v852 = vrot.slane %v843, %v851
    %v854 = vunpack.c.l.s4 1966171168
    %v855 = vunpack.c.0.s8 %v854
    %v856 = vlaneseq
    %v857 = vshrl.u32 %v856, 7
    %v858 = vsub.s32 %v855, %v857
    %v859 = vrot.slane %v845, %v858
    %v860 = vcombine.high %v852, %v852
    %v861 = vcombine.high %v859, %v859
    %v863 = vunpack.c.l.s4 1966171168
    %v864 = vunpack.c.0.s8 %v863
    %v865 = vlaneseq
    %v866 = vshrl.u32 %v865, 7
    %v867 = vsub.s32 %v864, %v866
    %v868 = vrot.slane %v852, %v867
    %v870 = vunpack.c.l.s4 1966171168
    %v871 = vunpack.c.0.s8 %v870
    %v872 = vlaneseq
    %v873 = vshrl.u32 %v872, 7
    %v874 = vsub.s32 %v871, %v873
    %v875 = vrot.slane %v859, %v874
    %v877 = vunpack.c.l.s4 1966171168
    %v878 = vunpack.c.0.s8 %v877
    %v879 = vlaneseq
    %v880 = vshrl.u32 %v879, 7
    %v881 = vsub.s32 %v878, %v880
    %v882 = vrot.slane %v860, %v881
    %v884 = vunpack.c.l.s4 1966171168
    %v885 = vunpack.c.0.s8 %v884
    %v886 = vlaneseq
    %v887 = vshrl.u32 %v886, 7
    %v888 = vsub.s32 %v885, %v887
    %v889 = vrot.slane %v861, %v888
    %v890 = vcombine.high %v868, %v868
    %v891 = vcombine.high %v875, %v875
    %v892 = vcombine.high %v882, %v882
    %v893 = vcombine.high %v889, %v889
    %v894 = vlaneseq
    %v895 = vshrl.u32 %v894, 7
    %v896 = vsub.s32 0, %v895
    %v897 = vrot.slane %v868, %v896
    %v898 = vlaneseq
    %v899 = vshrl.u32 %v898, 7
    %v900 = vsub.s32 0, %v899
    %v901 = vrot.slane %v882, %v900
    %v902 = vlaneseq
    %v903 = vshrl.u32 %v902, 7
    %v904 = vsub.s32 0, %v903
    %v905 = vrot.slane %v890, %v904
    %v906 = vlaneseq
    %v907 = vshrl.u32 %v906, 7
    %v908 = vsub.s32 0, %v907
    %v909 = vrot.slane %v892, %v908
    %v910 = vlaneseq
    %v911 = vshrl.u32 %v910, 7
    %v912 = vsub.s32 0, %v911
    %v913 = vrot.slane %v875, %v912
    %v914 = vlaneseq
    %v915 = vshrl.u32 %v914, 7
    %v916 = vsub.s32 0, %v915
    %v917 = vrot.slane %v889, %v916
    %v918 = vlaneseq
    %v919 = vshrl.u32 %v918, 7
    %v920 = vsub.s32 0, %v919
    %v921 = vrot.slane %v891, %v920
    %v922 = vlaneseq
    %v923 = vshrl.u32 %v922, 7
    %v924 = vsub.s32 0, %v923
    %v925 = vrot.slane %v893, %v924
    %v934 = vadd.f32 %v897, %v100
    %v935 = vadd.f32 %v901, %v105
    %v936 = vadd.f32 %v905, %v110
    %v937 = vadd.f32 %v909, %v115
    %v938 = vadd.f32 %v913, %v120
    %v939 = vadd.f32 %v917, %v125
    %v940 = vadd.f32 %v921, %v130
    %v941 = vadd.f32 %v925, %v135
    %v942 = vsel %vm293, %v934, -inf
    %v943 = vsel %vm293, %v935, -inf
    %v944 = vsel %vm293, %v936, -inf
    %v945 = vsel %vm293, %v937, -inf
    %v946 = vsel %vm293, %v938, -inf
    %v947 = vmax.f32 %v942, %v946
    %v948 = vsel %vm293, %v939, -inf
    %v949 = vmax.f32 %v943, %v948
    %v950 = vsel %vm293, %v940, -inf
    %v951 = vmax.f32 %v944, %v950
    %v952 = vsel %vm293, %v941, -inf
    %v953 = vmax.f32 %v945, %v952
    %v954 = vmax.f32 %v947, %v949
    %v955 = vmax.f32 %v951, %v953
    %v956 = vmax.f32 %v954, %v955
    %v957 = vsub.f32 %v934, %v956
    %v958 = vsub.f32 %v935, %v956
    %v959 = vsub.f32 %v936, %v956
    %v960 = vsub.f32 %v937, %v956
    %v961 = vsub.f32 %v938, %v956
    %v962 = vsub.f32 %v939, %v956
    %v963 = vsub.f32 %v940, %v956
    %v964 = vsub.f32 %v941, %v956
    %v965 = vmul.f32 %v957, 1.442695
    %v966 = vpow.pop %v965
    %v967 = vmul.f32 %v958, 1.442695
    %v968 = vpow.pop %v967
    %v969 = vmul.f32 %v959, 1.442695
    %v970 = vpow.pop %v969
    %v971 = vmul.f32 %v960, 1.442695
    %v972 = vpow.pop %v971
    %v973 = vmul.f32 %v961, 1.442695
    %v974 = vpow.pop %v973
    %v975 = vmul.f32 %v962, 1.442695
    %v976 = vpow.pop %v975
    %v977 = vmul.f32 %v963, 1.442695
    %v978 = vpow.pop %v977
    %v979 = vmul.f32 %v964, 1.442695
    %v980 = vpow.pop %v979
    %v981 = vsel %vm293, %v966, 0.0
    %v982 = vsel %vm293, %v968, 0.0
    %v983 = vadd.f32 %v981, %v982
    %v984 = vsel %vm293, %v970, 0.0
    %v985 = vadd.f32 %v983, %v984
    %v986 = vsel %vm293, %v972, 0.0
    %v987 = vadd.f32 %v985, %v986
    %v988 = vsel %vm293, %v974, 0.0
    %v989 = vadd.f32 %v987, %v988
    %v990 = vsel %vm293, %v976, 0.0
    %v991 = vadd.f32 %v989, %v990
    %v992 = vsel %vm293, %v978, 0.0
    %v993 = vadd.f32 %v991, %v992
    %v994 = vsel %vm293, %v980, 0.0
    %v995 = vadd.f32 %v993, %v994
    %v996 = vlog2.pop %v995
    %v997 = vmul.f32 %v996, 0.6931472
    %v998 = vadd.f32 %v956, %v997
    %v999 = vadd.f32 %v998, %v29
    %v1000 = vlaneseq
    %v1001 = vshrl.u32 %v1000, 7
    %v1002 = vsub.s32 5, %v1001
    %v1003 = vrot.slane %v188, %v1002
    %vm1004 = vcmp.eq.s32.totalorder %v1003, 1
    %v1005 = vsel %vm1004, %v999, %v843
    %v1007 = vcombine.high %v1005, %v1005
    %v1009 = vunpack.c.l.s4 1966171168
    %v1010 = vunpack.c.0.s8 %v1009
    %v1011 = vlaneseq
    %v1012 = vshrl.u32 %v1011, 7
    %v1013 = vsub.s32 %v1010, %v1012
    %v1014 = vrot.slane %v1005, %v1013
    %v1016 = vunpack.c.l.s4 1966171168
    %v1017 = vunpack.c.0.s8 %v1016
    %v1018 = vlaneseq
    %v1019 = vshrl.u32 %v1018, 7
    %v1020 = vsub.s32 %v1017, %v1019
    %v1021 = vrot.slane %v1007, %v1020
    %v1022 = vcombine.high %v1014, %v1014
    %v1023 = vcombine.high %v1021, %v1021
    %v1025 = vunpack.c.l.s4 1966171168
    %v1026 = vunpack.c.0.s8 %v1025
    %v1027 = vlaneseq
    %v1028 = vshrl.u32 %v1027, 7
    %v1029 = vsub.s32 %v1026, %v1028
    %v1030 = vrot.slane %v1014, %v1029
    %v1032 = vunpack.c.l.s4 1966171168
    %v1033 = vunpack.c.0.s8 %v1032
    %v1034 = vlaneseq
    %v1035 = vshrl.u32 %v1034, 7
    %v1036 = vsub.s32 %v1033, %v1035
    %v1037 = vrot.slane %v1021, %v1036
    %v1039 = vunpack.c.l.s4 1966171168
    %v1040 = vunpack.c.0.s8 %v1039
    %v1041 = vlaneseq
    %v1042 = vshrl.u32 %v1041, 7
    %v1043 = vsub.s32 %v1040, %v1042
    %v1044 = vrot.slane %v1022, %v1043
    %v1046 = vunpack.c.l.s4 1966171168
    %v1047 = vunpack.c.0.s8 %v1046
    %v1048 = vlaneseq
    %v1049 = vshrl.u32 %v1048, 7
    %v1050 = vsub.s32 %v1047, %v1049
    %v1051 = vrot.slane %v1023, %v1050
    %v1052 = vcombine.high %v1030, %v1030
    %v1053 = vcombine.high %v1037, %v1037
    %v1054 = vcombine.high %v1044, %v1044
    %v1055 = vcombine.high %v1051, %v1051
    %v1056 = vlaneseq
    %v1057 = vshrl.u32 %v1056, 7
    %v1058 = vsub.s32 0, %v1057
    %v1059 = vrot.slane %v1030, %v1058
    %v1060 = vlaneseq
    %v1061 = vshrl.u32 %v1060, 7
    %v1062 = vsub.s32 0, %v1061
    %v1063 = vrot.slane %v1044, %v1062
    %v1064 = vlaneseq
    %v1065 = vshrl.u32 %v1064, 7
    %v1066 = vsub.s32 0, %v1065
    %v1067 = vrot.slane %v1052, %v1066
    %v1068 = vlaneseq
    %v1069 = vshrl.u32 %v1068, 7
    %v1070 = vsub.s32 0, %v1069
    %v1071 = vrot.slane %v1054, %v1070
    %v1072 = vlaneseq
    %v1073 = vshrl.u32 %v1072, 7
    %v1074 = vsub.s32 0, %v1073
    %v1075 = vrot.slane %v1037, %v1074
    %v1076 = vlaneseq
    %v1077 = vshrl.u32 %v1076, 7
    %v1078 = vsub.s32 0, %v1077
    %v1079 = vrot.slane %v1051, %v1078
    %v1080 = vlaneseq
    %v1081 = vshrl.u32 %v1080, 7
    %v1082 = vsub.s32 0, %v1081
    %v1083 = vrot.slane %v1053, %v1082
    %v1084 = vlaneseq
    %v1085 = vshrl.u32 %v1084, 7
    %v1086 = vsub.s32 0, %v1085
    %v1087 = vrot.slane %v1055, %v1086
    %v1096 = vadd.f32 %v1059, %v100
    %v1097 = vadd.f32 %v1063, %v105
    %v1098 = vadd.f32 %v1067, %v110
    %v1099 = vadd.f32 %v1071, %v115
    %v1100 = vadd.f32 %v1075, %v120
    %v1101 = vadd.f32 %v1079, %v125
    %v1102 = vadd.f32 %v1083, %v130
    %v1103 = vadd.f32 %v1087, %v135
    %v1104 = vsel %vm293, %v1096, -inf
    %v1105 = vsel %vm293, %v1097, -inf
    %v1106 = vsel %vm293, %v1098, -inf
    %v1107 = vsel %vm293, %v1099, -inf
    %v1108 = vsel %vm293, %v1100, -inf
    %v1109 = vmax.f32 %v1104, %v1108
    %v1110 = vsel %vm293, %v1101, -inf
    %v1111 = vmax.f32 %v1105, %v1110
    %v1112 = vsel %vm293, %v1102, -inf
    %v1113 = vmax.f32 %v1106, %v1112
    %v1114 = vsel %vm293, %v1103, -inf
    %v1115 = vmax.f32 %v1107, %v1114
    %v1116 = vmax.f32 %v1109, %v1111
    %v1117 = vmax.f32 %v1113, %v1115
    %v1118 = vmax.f32 %v1116, %v1117
    %v1119 = vsub.f32 %v1096, %v1118
    %v1120 = vsub.f32 %v1097, %v1118
    %v1121 = vsub.f32 %v1098, %v1118
    %v1122 = vsub.f32 %v1099, %v1118
    %v1123 = vsub.f32 %v1100, %v1118
    %v1124 = vsub.f32 %v1101, %v1118
    %v1125 = vsub.f32 %v1102, %v1118
    %v1126 = vsub.f32 %v1103, %v1118
    %v1127 = vmul.f32 %v1119, 1.442695
    %v1128 = vpow.pop %v1127
    %v1129 = vmul.f32 %v1120, 1.442695
    %v1130 = vpow.pop %v1129
    %v1131 = vmul.f32 %v1121, 1.442695
    %v1132 = vpow.pop %v1131
    %v1133 = vmul.f32 %v1122, 1.442695
    %v1134 = vpow.pop %v1133
    %v1135 = vmul.f32 %v1123, 1.442695
    %v1136 = vpow.pop %v1135
    %v1137 = vmul.f32 %v1124, 1.442695
    %v1138 = vpow.pop %v1137
    %v1139 = vmul.f32 %v1125, 1.442695
    %v1140 = vpow.pop %v1139
    %v1141 = vmul.f32 %v1126, 1.442695
    %v1142 = vpow.pop %v1141
    %v1143 = vsel %vm293, %v1128, 0.0
    %v1144 = vsel %vm293, %v1130, 0.0
    %v1145 = vadd.f32 %v1143, %v1144
    %v1146 = vsel %vm293, %v1132, 0.0
    %v1147 = vadd.f32 %v1145, %v1146
    %v1148 = vsel %vm293, %v1134, 0.0
    %v1149 = vadd.f32 %v1147, %v1148
    %v1150 = vsel %vm293, %v1136, 0.0
    %v1151 = vadd.f32 %v1149, %v1150
    %v1152 = vsel %vm293, %v1138, 0.0
    %v1153 = vadd.f32 %v1151, %v1152
    %v1154 = vsel %vm293, %v1140, 0.0
    %v1155 = vadd.f32 %v1153, %v1154
    %v1156 = vsel %vm293, %v1142, 0.0
    %v1157 = vadd.f32 %v1155, %v1156
    %v1158 = vlog2.pop %v1157
    %v1159 = vmul.f32 %v1158, 0.6931472
    %v1160 = vadd.f32 %v1118, %v1159
    %v1161 = vadd.f32 %v1160, %v30
    %v1162 = vlaneseq
    %v1163 = vshrl.u32 %v1162, 7
    %v1164 = vsub.s32 6, %v1163
    %v1165 = vrot.slane %v188, %v1164
    %vm1166 = vcmp.eq.s32.totalorder %v1165, 1
    %v1167 = vsel %vm1166, %v1161, %v1005
    %v1169 = vcombine.high %v1167, %v1167
    %v1171 = vunpack.c.l.s4 1966171168
    %v1172 = vunpack.c.0.s8 %v1171
    %v1173 = vlaneseq
    %v1174 = vshrl.u32 %v1173, 7
    %v1175 = vsub.s32 %v1172, %v1174
    %v1176 = vrot.slane %v1167, %v1175
    %v1178 = vunpack.c.l.s4 1966171168
    %v1179 = vunpack.c.0.s8 %v1178
    %v1180 = vlaneseq
    %v1181 = vshrl.u32 %v1180, 7
    %v1182 = vsub.s32 %v1179, %v1181
    %v1183 = vrot.slane %v1169, %v1182
    %v1184 = vcombine.high %v1176, %v1176
    %v1185 = vcombine.high %v1183, %v1183
    %v1187 = vunpack.c.l.s4 1966171168
    %v1188 = vunpack.c.0.s8 %v1187
    %v1189 = vlaneseq
    %v1190 = vshrl.u32 %v1189, 7
    %v1191 = vsub.s32 %v1188, %v1190
    %v1192 = vrot.slane %v1176, %v1191
    %v1194 = vunpack.c.l.s4 1966171168
    %v1195 = vunpack.c.0.s8 %v1194
    %v1196 = vlaneseq
    %v1197 = vshrl.u32 %v1196, 7
    %v1198 = vsub.s32 %v1195, %v1197
    %v1199 = vrot.slane %v1183, %v1198
    %v1201 = vunpack.c.l.s4 1966171168
    %v1202 = vunpack.c.0.s8 %v1201
    %v1203 = vlaneseq
    %v1204 = vshrl.u32 %v1203, 7
    %v1205 = vsub.s32 %v1202, %v1204
    %v1206 = vrot.slane %v1184, %v1205
    %v1208 = vunpack.c.l.s4 1966171168
    %v1209 = vunpack.c.0.s8 %v1208
    %v1210 = vlaneseq
    %v1211 = vshrl.u32 %v1210, 7
    %v1212 = vsub.s32 %v1209, %v1211
    %v1213 = vrot.slane %v1185, %v1212
    %v1214 = vcombine.high %v1192, %v1192
    %v1215 = vcombine.high %v1199, %v1199
    %v1216 = vcombine.high %v1206, %v1206
    %v1217 = vcombine.high %v1213, %v1213
    %v1218 = vlaneseq
    %v1219 = vshrl.u32 %v1218, 7
    %v1220 = vsub.s32 0, %v1219
    %v1221 = vrot.slane %v1192, %v1220
    %v1222 = vlaneseq
    %v1223 = vshrl.u32 %v1222, 7
    %v1224 = vsub.s32 0, %v1223
    %v1225 = vrot.slane %v1206, %v1224
    %v1226 = vlaneseq
    %v1227 = vshrl.u32 %v1226, 7
    %v1228 = vsub.s32 0, %v1227
    %v1229 = vrot.slane %v1214, %v1228
    %v1230 = vlaneseq
    %v1231 = vshrl.u32 %v1230, 7
    %v1232 = vsub.s32 0, %v1231
    %v1233 = vrot.slane %v1216, %v1232
    %v1234 = vlaneseq
    %v1235 = vshrl.u32 %v1234, 7
    %v1236 = vsub.s32 0, %v1235
    %v1237 = vrot.slane %v1199, %v1236
    %v1238 = vlaneseq
    %v1239 = vshrl.u32 %v1238, 7
    %v1240 = vsub.s32 0, %v1239
    %v1241 = vrot.slane %v1213, %v1240
    %v1242 = vlaneseq
    %v1243 = vshrl.u32 %v1242, 7
    %v1244 = vsub.s32 0, %v1243
    %v1245 = vrot.slane %v1215, %v1244
    %v1246 = vlaneseq
    %v1247 = vshrl.u32 %v1246, 7
    %v1248 = vsub.s32 0, %v1247
    %v1249 = vrot.slane %v1217, %v1248
    %v1258 = vadd.f32 %v1221, %v100
    %v1259 = vadd.f32 %v1225, %v105
    %v1260 = vadd.f32 %v1229, %v110
    %v1261 = vadd.f32 %v1233, %v115
    %v1262 = vadd.f32 %v1237, %v120
    %v1263 = vadd.f32 %v1241, %v125
    %v1264 = vadd.f32 %v1245, %v130
    %v1265 = vadd.f32 %v1249, %v135
    %v1266 = vsel %vm293, %v1258, -inf
    %v1267 = vsel %vm293, %v1259, -inf
    %v1268 = vsel %vm293, %v1260, -inf
    %v1269 = vsel %vm293, %v1261, -inf
    %v1270 = vsel %vm293, %v1262, -inf
    %v1271 = vmax.f32 %v1266, %v1270
    %v1272 = vsel %vm293, %v1263, -inf
    %v1273 = vmax.f32 %v1267, %v1272
    %v1274 = vsel %vm293, %v1264, -inf
    %v1275 = vmax.f32 %v1268, %v1274
    %v1276 = vsel %vm293, %v1265, -inf
    %v1277 = vmax.f32 %v1269, %v1276
    %v1278 = vmax.f32 %v1271, %v1273
    %v1279 = vmax.f32 %v1275, %v1277
    %v1280 = vmax.f32 %v1278, %v1279
    %v1281 = vsub.f32 %v1258, %v1280
    %v1282 = vsub.f32 %v1259, %v1280
    %v1283 = vsub.f32 %v1260, %v1280
    %v1284 = vsub.f32 %v1261, %v1280
    %v1285 = vsub.f32 %v1262, %v1280
    %v1286 = vsub.f32 %v1263, %v1280
    %v1287 = vsub.f32 %v1264, %v1280
    %v1288 = vsub.f32 %v1265, %v1280
    %v1289 = vmul.f32 %v1281, 1.442695
    %v1290 = vpow.pop %v1289
    %v1291 = vmul.f32 %v1282, 1.442695
    %v1292 = vpow.pop %v1291
    %v1293 = vmul.f32 %v1283, 1.442695
    %v1294 = vpow.pop %v1293
    %v1295 = vmul.f32 %v1284, 1.442695
    %v1296 = vpow.pop %v1295
    %v1297 = vmul.f32 %v1285, 1.442695
    %v1298 = vpow.pop %v1297
    %v1299 = vmul.f32 %v1286, 1.442695
    %v1300 = vpow.pop %v1299
    %v1301 = vmul.f32 %v1287, 1.442695
    %v1302 = vpow.pop %v1301
    %v1303 = vmul.f32 %v1288, 1.442695
    %v1304 = vpow.pop %v1303
    %v1305 = vsel %vm293, %v1290, 0.0
    %v1306 = vsel %vm293, %v1292, 0.0
    %v1307 = vadd.f32 %v1305, %v1306
    %v1308 = vsel %vm293, %v1294, 0.0
    %v1309 = vadd.f32 %v1307, %v1308
    %v1310 = vsel %vm293, %v1296, 0.0
    %v1311 = vadd.f32 %v1309, %v1310
    %v1312 = vsel %vm293, %v1298, 0.0
    %v1313 = vadd.f32 %v1311, %v1312
    %v1314 = vsel %vm293, %v1300, 0.0
    %v1315 = vadd.f32 %v1313, %v1314
    %v1316 = vsel %vm293, %v1302, 0.0
    %v1317 = vadd.f32 %v1315, %v1316
    %v1318 = vsel %vm293, %v1304, 0.0
    %v1319 = vadd.f32 %v1317, %v1318
    %v1320 = vlog2.pop %v1319
    %v1321 = vmul.f32 %v1320, 0.6931472
    %v1322 = vadd.f32 %v1280, %v1321
    %v1323 = vadd.f32 %v1322, %v31
    %v1324 = vlaneseq
    %v1325 = vshrl.u32 %v1324, 7
    %v1326 = vsub.s32 7, %v1325
    %v1327 = vrot.slane %v188, %v1326
    %vm1328 = vcmp.eq.s32.totalorder %v1327, 1
    %v1329 = vsel %vm1328, %v1323, %v1167
    %1331 = vset.pattern.permute.xlu0 0
    %1332 = vperm.xlu0 %1331, %v51
    %v1333 = vpop.permute.xlu0 %1332
    %v1335 = vadd.f32 %v1329, %v1333
    %v1336 = vsel %vm293, %v1335, -inf
    %v1337 = vrot.slane %v1336, 4
    %v1338 = vmax.f32 %v1336, %v1337
    %v1339 = vrot.slane %v1338, 2
    %v1340 = vmax.f32 %v1338, %v1339
    %v1341 = vrot.slane %v1340, 1
    %v1342 = vmax.f32 %v1340, %v1341
    %v1343 = vsub.f32 %v1335, %v1342
    %v1344 = vmul.f32 %v1343, 1.442695
    %v1345 = vpow.pop %v1344
    %v1346 = vsel %vm293, %v1345, 0.0
    %v1347 = vrot.slane %v1346, 4
    %v1348 = vadd.f32 %v1346, %v1347
    %v1349 = vrot.slane %v1348, 2
    %v1350 = vadd.f32 %v1348, %v1349
    %v1351 = vrot.slane %v1350, 1
    %v1352 = vadd.f32 %v1350, %v1351
    %v1353 = vlog2.pop %v1352
    %v1354 = vmul.f32 %v1353, 0.6931472
    %v1355 = vadd.f32 %v1342, %v1354
    %v1356 = vcombine.high %v33, %v33
    %v1358 = vunpack.c.l.s4 1966171168
    %v1359 = vunpack.c.0.s8 %v1358
    %v1360 = vlaneseq
    %v1361 = vshrl.u32 %v1360, 7
    %v1362 = vsub.s32 %v1359, %v1361
    %v1363 = vrot.slane %v33, %v1362
    %v1365 = vunpack.c.l.s4 1966171168
    %v1366 = vunpack.c.0.s8 %v1365
    %v1367 = vlaneseq
    %v1368 = vshrl.u32 %v1367, 7
    %v1369 = vsub.s32 %v1366, %v1368
    %v1370 = vrot.slane %v1356, %v1369
    %v1371 = vcombine.high %v1363, %v1363
    %v1372 = vcombine.high %v1370, %v1370
    %v1374 = vunpack.c.l.s4 1966171168
    %v1375 = vunpack.c.0.s8 %v1374
    %v1376 = vlaneseq
    %v1377 = vshrl.u32 %v1376, 7
    %v1378 = vsub.s32 %v1375, %v1377
    %v1379 = vrot.slane %v1363, %v1378
    %v1381 = vunpack.c.l.s4 1966171168
    %v1382 = vunpack.c.0.s8 %v1381
    %v1383 = vlaneseq
    %v1384 = vshrl.u32 %v1383, 7
    %v1385 = vsub.s32 %v1382, %v1384
    %v1386 = vrot.slane %v1370, %v1385
    %v1388 = vunpack.c.l.s4 1966171168
    %v1389 = vunpack.c.0.s8 %v1388
    %v1390 = vlaneseq
    %v1391 = vshrl.u32 %v1390, 7
    %v1392 = vsub.s32 %v1389, %v1391
    %v1393 = vrot.slane %v1371, %v1392
    %v1395 = vunpack.c.l.s4 1966171168
    %v1396 = vunpack.c.0.s8 %v1395
    %v1397 = vlaneseq
    %v1398 = vshrl.u32 %v1397, 7
    %v1399 = vsub.s32 %v1396, %v1398
    %v1400 = vrot.slane %v1372, %v1399
    %v1401 = vcombine.high %v1379, %v1379
    %v1402 = vcombine.high %v1386, %v1386
    %v1403 = vcombine.high %v1393, %v1393
    %v1404 = vcombine.high %v1400, %v1400
    %v1406 = vunpack.c.l.s4 1966171168
    %v1407 = vunpack.c.0.s8 %v1406
    %v1408 = vlaneseq
    %v1409 = vshrl.u32 %v1408, 7
    %v1410 = vsub.s32 %v1407, %v1409
    %v1411 = vrot.slane %v34, %v1410
    %v1413 = vunpack.c.l.s4 1966171168
    %v1414 = vunpack.c.0.s8 %v1413
    %v1415 = vlaneseq
    %v1416 = vshrl.u32 %v1415, 7
    %v1417 = vsub.s32 %v1414, %v1416
    %v1418 = vrot.slane %v1411, %v1417
    %v1419 = vlaneseq
    %v1420 = vshrl.u32 %v1419, 7
    %v1421 = vsub.s32 0, %v1420
    %v1422 = vrot.slane %v1393, %v1421
    %v1423 = vlaneseq
    %v1424 = vshrl.u32 %v1423, 7
    %v1425 = vsub.s32 0, %v1424
    %v1426 = vrot.slane %v1401, %v1425
    %v1427 = vlaneseq
    %v1428 = vshrl.u32 %v1427, 7
    %v1429 = vsub.s32 0, %v1428
    %v1430 = vrot.slane %v1403, %v1429
    %v1431 = vlaneseq
    %v1432 = vshrl.u32 %v1431, 7
    %v1433 = vsub.s32 0, %v1432
    %v1434 = vrot.slane %v1386, %v1433
    %v1435 = vlaneseq
    %v1436 = vshrl.u32 %v1435, 7
    %v1437 = vsub.s32 0, %v1436
    %v1438 = vrot.slane %v1400, %v1437
    %v1439 = vlaneseq
    %v1440 = vshrl.u32 %v1439, 7
    %v1441 = vsub.s32 0, %v1440
    %v1442 = vrot.slane %v1402, %v1441
    %v1443 = vlaneseq
    %v1444 = vshrl.u32 %v1443, 7
    %v1445 = vsub.s32 0, %v1444
    %v1446 = vrot.slane %v1404, %v1445
    %v1447 = vlaneseq
    %v1448 = vshrl.u32 %v1447, 7
    %v1449 = vsub.s32 0, %v1448
    %v1450 = vrot.slane %v1418, %v1449
    %vm1451 = vcmp.eq.s32.totalorder %v53, %v1422
    %vm1452 = vcmp.eq.s32.totalorder %v53, %v1426
    %vm1453 = vcmp.eq.s32.totalorder %v53, %v1430
    %vm1454 = vcmp.eq.s32.totalorder %v53, %v1434
    %vm1455 = vcmp.eq.s32.totalorder %v53, %v1438
    %vm1456 = vcmp.eq.s32.totalorder %v53, %v1442
    %vm1457 = vcmp.eq.s32.totalorder %v53, %v1446
    %vm1458 = vcmp.eq.s32.totalorder %v53, %v1450
    %v1459 = vsel %vm1451, 1, 0
    %v1460 = vsel %vm1452, 1, 0
    %v1461 = vsel %vm1453, 1, 0
    %v1462 = vsel %vm1454, 1, 0
    %v1463 = vsel %vm1455, 1, 0
    %v1464 = vsel %vm1456, 1, 0
    %v1465 = vsel %vm1457, 1, 0
    %v1466 = vsel %vm1458, 1, 0
    %v1467 = vcvt.s32.f32 %v1459
    %v1468 = vcvt.s32.f32 %v1460
    %v1469 = vcvt.s32.f32 %v1461
    %v1470 = vcvt.s32.f32 %v1462
    %v1471 = vcvt.s32.f32 %v1463
    %v1472 = vcvt.s32.f32 %v1464
    %v1473 = vcvt.s32.f32 %v1465
    %v1474 = vcvt.s32.f32 %v1466
    %v1475 = vmul.f32 %v24, %v1467
    %v1476 = vmul.f32 %v25, %v1468
    %v1477 = vmul.f32 %v26, %v1469
    %v1478 = vmul.f32 %v27, %v1470
    %v1479 = vmul.f32 %v28, %v1471
    %v1480 = vmul.f32 %v29, %v1472
    %v1481 = vmul.f32 %v30, %v1473
    %v1482 = vmul.f32 %v31, %v1474
    %v1483 = vsel %vm293, %v1475, 0.0
    %v1484 = vrot.slane %v1483, 4
    %v1485 = vadd.f32 %v1483, %v1484
    %v1486 = vrot.slane %v1485, 2
    %v1487 = vadd.f32 %v1485, %v1486
    %v1488 = vrot.slane %v1487, 1
    %v1489 = vadd.f32 %v1487, %v1488
    %v1490 = vsel %vm293, %v1476, 0.0
    %v1491 = vrot.slane %v1490, 4
    %v1492 = vadd.f32 %v1490, %v1491
    %v1493 = vrot.slane %v1492, 2
    %v1494 = vadd.f32 %v1492, %v1493
    %v1495 = vrot.slane %v1494, 1
    %v1496 = vadd.f32 %v1494, %v1495
    %v1497 = vsel %vm293, %v1477, 0.0
    %v1498 = vrot.slane %v1497, 4
    %v1499 = vadd.f32 %v1497, %v1498
    %v1500 = vrot.slane %v1499, 2
    %v1501 = vadd.f32 %v1499, %v1500
    %v1502 = vrot.slane %v1501, 1
    %v1503 = vadd.f32 %v1501, %v1502
    %v1504 = vsel %vm293, %v1478, 0.0
    %v1505 = vrot.slane %v1504, 4
    %v1506 = vadd.f32 %v1504, %v1505
    %v1507 = vrot.slane %v1506, 2
    %v1508 = vadd.f32 %v1506, %v1507
    %v1509 = vrot.slane %v1508, 1
    %v1510 = vadd.f32 %v1508, %v1509
    %v1511 = vsel %vm293, %v1479, 0.0
    %v1512 = vrot.slane %v1511, 4
    %v1513 = vadd.f32 %v1511, %v1512
    %v1514 = vrot.slane %v1513, 2
    %v1515 = vadd.f32 %v1513, %v1514
    %v1516 = vrot.slane %v1515, 1
    %v1517 = vadd.f32 %v1515, %v1516
    %v1518 = vsel %vm293, %v1480, 0.0
    %v1519 = vrot.slane %v1518, 4
    %v1520 = vadd.f32 %v1518, %v1519
    %v1521 = vrot.slane %v1520, 2
    %v1522 = vadd.f32 %v1520, %v1521
    %v1523 = vrot.slane %v1522, 1
    %v1524 = vadd.f32 %v1522, %v1523
    %v1525 = vsel %vm293, %v1481, 0.0
    %v1526 = vrot.slane %v1525, 4
    %v1527 = vadd.f32 %v1525, %v1526
    %v1528 = vrot.slane %v1527, 2
    %v1529 = vadd.f32 %v1527, %v1528
    %v1530 = vrot.slane %v1529, 1
    %v1531 = vadd.f32 %v1529, %v1530
    %v1532 = vsel %vm293, %v1482, 0.0
    %v1533 = vrot.slane %v1532, 4
    %v1534 = vadd.f32 %v1532, %v1533
    %v1535 = vrot.slane %v1534, 2
    %v1536 = vadd.f32 %v1534, %v1535
    %v1537 = vrot.slane %v1536, 1
    %v1538 = vadd.f32 %v1536, %v1537
    %v1539 = vmul.u32 %v33, 8
    %v1540 = vmul.u32 %v34, 8
    %v1541 = vrot.slane %v33, 7
    %v1542 = vadd.s32 %v1539, %v1541
    %v1543 = vadd.s32 %v1540, %v1541
    %v1544 = vadd.s32 %v53, 8
    %v1545 = vadd.s32 %v53, 16
    %v1546 = vadd.s32 %v53, 24
    %v1547 = vadd.s32 %v53, 32
    %v1548 = vadd.s32 %v53, 40
    %v1549 = vadd.s32 %v53, 48
    %v1550 = vadd.s32 %v53, 56
    %v1551 = vcombine.high %v1542, %v1542
    %v1553 = vunpack.c.l.s4 1966171168
    %v1554 = vunpack.c.0.s8 %v1553
    %v1555 = vlaneseq
    %v1556 = vshrl.u32 %v1555, 7
    %v1557 = vsub.s32 %v1554, %v1556
    %v1558 = vrot.slane %v1542, %v1557
    %v1560 = vunpack.c.l.s4 1966171168
    %v1561 = vunpack.c.0.s8 %v1560
    %v1562 = vlaneseq
    %v1563 = vshrl.u32 %v1562, 7
    %v1564 = vsub.s32 %v1561, %v1563
    %v1565 = vrot.slane %v1551, %v1564
    %v1566 = vcombine.high %v1558, %v1558
    %v1567 = vcombine.high %v1565, %v1565
    %v1569 = vunpack.c.l.s4 1966171168
    %v1570 = vunpack.c.0.s8 %v1569
    %v1571 = vlaneseq
    %v1572 = vshrl.u32 %v1571, 7
    %v1573 = vsub.s32 %v1570, %v1572
    %v1574 = vrot.slane %v1558, %v1573
    %v1576 = vunpack.c.l.s4 1966171168
    %v1577 = vunpack.c.0.s8 %v1576
    %v1578 = vlaneseq
    %v1579 = vshrl.u32 %v1578, 7
    %v1580 = vsub.s32 %v1577, %v1579
    %v1581 = vrot.slane %v1565, %v1580
    %v1583 = vunpack.c.l.s4 1966171168
    %v1584 = vunpack.c.0.s8 %v1583
    %v1585 = vlaneseq
    %v1586 = vshrl.u32 %v1585, 7
    %v1587 = vsub.s32 %v1584, %v1586
    %v1588 = vrot.slane %v1566, %v1587
    %v1590 = vunpack.c.l.s4 1966171168
    %v1591 = vunpack.c.0.s8 %v1590
    %v1592 = vlaneseq
    %v1593 = vshrl.u32 %v1592, 7
    %v1594 = vsub.s32 %v1591, %v1593
    %v1595 = vrot.slane %v1567, %v1594
    %v1596 = vcombine.high %v1574, %v1574
    %v1597 = vcombine.high %v1581, %v1581
    %v1598 = vcombine.high %v1588, %v1588
    %v1599 = vcombine.high %v1595, %v1595
    %v1601 = vunpack.c.l.s4 1966171168
    %v1602 = vunpack.c.0.s8 %v1601
    %v1603 = vlaneseq
    %v1604 = vshrl.u32 %v1603, 7
    %v1605 = vsub.s32 %v1602, %v1604
    %v1606 = vrot.slane %v1543, %v1605
    %v1608 = vunpack.c.l.s4 1966171168
    %v1609 = vunpack.c.0.s8 %v1608
    %v1610 = vlaneseq
    %v1611 = vshrl.u32 %v1610, 7
    %v1612 = vsub.s32 %v1609, %v1611
    %v1613 = vrot.slane %v1606, %v1612
    %v1614 = vlaneseq
    %v1615 = vshrl.u32 %v1614, 7
    %v1616 = vsub.s32 0, %v1615
    %v1617 = vrot.slane %v1588, %v1616
    %v1618 = vlaneseq
    %v1619 = vshrl.u32 %v1618, 7
    %v1620 = vsub.s32 0, %v1619
    %v1621 = vrot.slane %v1596, %v1620
    %v1622 = vlaneseq
    %v1623 = vshrl.u32 %v1622, 7
    %v1624 = vsub.s32 0, %v1623
    %v1625 = vrot.slane %v1598, %v1624
    %v1626 = vlaneseq
    %v1627 = vshrl.u32 %v1626, 7
    %v1628 = vsub.s32 0, %v1627
    %v1629 = vrot.slane %v1581, %v1628
    %v1630 = vlaneseq
    %v1631 = vshrl.u32 %v1630, 7
    %v1632 = vsub.s32 0, %v1631
    %v1633 = vrot.slane %v1595, %v1632
    %v1634 = vlaneseq
    %v1635 = vshrl.u32 %v1634, 7
    %v1636 = vsub.s32 0, %v1635
    %v1637 = vrot.slane %v1597, %v1636
    %v1638 = vlaneseq
    %v1639 = vshrl.u32 %v1638, 7
    %v1640 = vsub.s32 0, %v1639
    %v1641 = vrot.slane %v1599, %v1640
    %v1642 = vlaneseq
    %v1643 = vshrl.u32 %v1642, 7
    %v1644 = vsub.s32 0, %v1643
    %v1645 = vrot.slane %v1613, %v1644
    %vm1646 = vcmp.eq.s32.totalorder %v53, %v1617
    %vm1647 = vcmp.eq.s32.totalorder %v1544, %v1617
    %vm1648 = vcmp.eq.s32.totalorder %v1545, %v1617
    %vm1649 = vcmp.eq.s32.totalorder %v1546, %v1617
    %vm1650 = vcmp.eq.s32.totalorder %v1547, %v1617
    %vm1651 = vcmp.eq.s32.totalorder %v1548, %v1617
    %vm1652 = vcmp.eq.s32.totalorder %v1549, %v1617
    %vm1653 = vcmp.eq.s32.totalorder %v1550, %v1617
    %vm1654 = vcmp.eq.s32.totalorder %v53, %v1621
    %vm1655 = vcmp.eq.s32.totalorder %v1544, %v1621
    %vm1656 = vcmp.eq.s32.totalorder %v1545, %v1621
    %vm1657 = vcmp.eq.s32.totalorder %v1546, %v1621
    %vm1658 = vcmp.eq.s32.totalorder %v1547, %v1621
    %vm1659 = vcmp.eq.s32.totalorder %v1548, %v1621
    %vm1660 = vcmp.eq.s32.totalorder %v1549, %v1621
    %vm1661 = vcmp.eq.s32.totalorder %v1550, %v1621
    %vm1662 = vcmp.eq.s32.totalorder %v53, %v1625
    %vm1663 = vcmp.eq.s32.totalorder %v1544, %v1625
    %vm1664 = vcmp.eq.s32.totalorder %v1545, %v1625
    %vm1665 = vcmp.eq.s32.totalorder %v1546, %v1625
    %vm1666 = vcmp.eq.s32.totalorder %v1547, %v1625
    %vm1667 = vcmp.eq.s32.totalorder %v1548, %v1625
    %vm1668 = vcmp.eq.s32.totalorder %v1549, %v1625
    %vm1669 = vcmp.eq.s32.totalorder %v1550, %v1625
    %vm1670 = vcmp.eq.s32.totalorder %v53, %v1629
    %vm1671 = vcmp.eq.s32.totalorder %v1544, %v1629
    %vm1672 = vcmp.eq.s32.totalorder %v1545, %v1629
    %vm1673 = vcmp.eq.s32.totalorder %v1546, %v1629
    %vm1674 = vcmp.eq.s32.totalorder %v1547, %v1629
    %vm1675 = vcmp.eq.s32.totalorder %v1548, %v1629
    %vm1676 = vcmp.eq.s32.totalorder %v1549, %v1629
    %vm1677 = vcmp.eq.s32.totalorder %v1550, %v1629
    %vm1678 = vcmp.eq.s32.totalorder %v53, %v1633
    %vm1679 = vcmp.eq.s32.totalorder %v1544, %v1633
    %vm1680 = vcmp.eq.s32.totalorder %v1545, %v1633
    %vm1681 = vcmp.eq.s32.totalorder %v1546, %v1633
    %vm1682 = vcmp.eq.s32.totalorder %v1547, %v1633
    %vm1683 = vcmp.eq.s32.totalorder %v1548, %v1633
    %vm1684 = vcmp.eq.s32.totalorder %v1549, %v1633
    %vm1685 = vcmp.eq.s32.totalorder %v1550, %v1633
    %vm1686 = vcmp.eq.s32.totalorder %v53, %v1637
    %vm1687 = vcmp.eq.s32.totalorder %v1544, %v1637
    %vm1688 = vcmp.eq.s32.totalorder %v1545, %v1637
    %vm1689 = vcmp.eq.s32.totalorder %v1546, %v1637
    %vm1690 = vcmp.eq.s32.totalorder %v1547, %v1637
    %vm1691 = vcmp.eq.s32.totalorder %v1548, %v1637
    %vm1692 = vcmp.eq.s32.totalorder %v1549, %v1637
    %vm1693 = vcmp.eq.s32.totalorder %v1550, %v1637
    %vm1694 = vcmp.eq.s32.totalorder %v53, %v1641
    %vm1695 = vcmp.eq.s32.totalorder %v1544, %v1641
    %vm1696 = vcmp.eq.s32.totalorder %v1545, %v1641
    %vm1697 = vcmp.eq.s32.totalorder %v1546, %v1641
    %vm1698 = vcmp.eq.s32.totalorder %v1547, %v1641
    %vm1699 = vcmp.eq.s32.totalorder %v1548, %v1641
    %vm1700 = vcmp.eq.s32.totalorder %v1549, %v1641
    %vm1701 = vcmp.eq.s32.totalorder %v1550, %v1641
    %vm1702 = vcmp.eq.s32.totalorder %v53, %v1645
    %vm1703 = vcmp.eq.s32.totalorder %v1544, %v1645
    %vm1704 = vcmp.eq.s32.totalorder %v1545, %v1645
    %vm1705 = vcmp.eq.s32.totalorder %v1546, %v1645
    %vm1706 = vcmp.eq.s32.totalorder %v1547, %v1645
    %vm1707 = vcmp.eq.s32.totalorder %v1548, %v1645
    %vm1708 = vcmp.eq.s32.totalorder %v1549, %v1645
    %vm1709 = vcmp.eq.s32.totalorder %v1550, %v1645
    %v1710 = vsel %vm1646, 1, 0
    %v1711 = vsel %vm1647, 1, 0
    %v1712 = vsel %vm1648, 1, 0
    %v1713 = vsel %vm1649, 1, 0
    %v1714 = vsel %vm1650, 1, 0
    %v1715 = vsel %vm1651, 1, 0
    %v1716 = vsel %vm1652, 1, 0
    %v1717 = vsel %vm1653, 1, 0
    %v1718 = vsel %vm1654, 1, 0
    %v1719 = vsel %vm1655, 1, 0
    %v1720 = vsel %vm1656, 1, 0
    %v1721 = vsel %vm1657, 1, 0
    %v1722 = vsel %vm1658, 1, 0
    %v1723 = vsel %vm1659, 1, 0
    %v1724 = vsel %vm1660, 1, 0
    %v1725 = vsel %vm1661, 1, 0
    %v1726 = vsel %vm1662, 1, 0
    %v1727 = vsel %vm1663, 1, 0
    %v1728 = vsel %vm1664, 1, 0
    %v1729 = vsel %vm1665, 1, 0
    %v1730 = vsel %vm1666, 1, 0
    %v1731 = vsel %vm1667, 1, 0
    %v1732 = vsel %vm1668, 1, 0
    %v1733 = vsel %vm1669, 1, 0
    %v1734 = vsel %vm1670, 1, 0
    %v1735 = vsel %vm1671, 1, 0
    %v1736 = vsel %vm1672, 1, 0
    %v1737 = vsel %vm1673, 1, 0
    %v1738 = vsel %vm1674, 1, 0
    %v1739 = vsel %vm1675, 1, 0
    %v1740 = vsel %vm1676, 1, 0
    %v1741 = vsel %vm1677, 1, 0
    %v1742 = vsel %vm1678, 1, 0
    %v1743 = vsel %vm1679, 1, 0
    %v1744 = vsel %vm1680, 1, 0
    %v1745 = vsel %vm1681, 1, 0
    %v1746 = vsel %vm1682, 1, 0
    %v1747 = vsel %vm1683, 1, 0
    %v1748 = vsel %vm1684, 1, 0
    %v1749 = vsel %vm1685, 1, 0
    %v1750 = vsel %vm1686, 1, 0
    %v1751 = vsel %vm1687, 1, 0
    %v1752 = vsel %vm1688, 1, 0
    %v1753 = vsel %vm1689, 1, 0
    %v1754 = vsel %vm1690, 1, 0
    %v1755 = vsel %vm1691, 1, 0
    %v1756 = vsel %vm1692, 1, 0
    %v1757 = vsel %vm1693, 1, 0
    %v1758 = vsel %vm1694, 1, 0
    %v1759 = vsel %vm1695, 1, 0
    %v1760 = vsel %vm1696, 1, 0
    %v1761 = vsel %vm1697, 1, 0
    %v1762 = vsel %vm1698, 1, 0
    %v1763 = vsel %vm1699, 1, 0
    %v1764 = vsel %vm1700, 1, 0
    %v1765 = vsel %vm1701, 1, 0
    %v1766 = vsel %vm1702, 1, 0
    %v1767 = vsel %vm1703, 1, 0
    %v1768 = vsel %vm1704, 1, 0
    %v1769 = vsel %vm1705, 1, 0
    %v1770 = vsel %vm1706, 1, 0
    %v1771 = vsel %vm1707, 1, 0
    %v1772 = vsel %vm1708, 1, 0
    %v1773 = vsel %vm1709, 1, 0
    %v1774 = vcvt.s32.f32 %v1710
    %v1775 = vcvt.s32.f32 %v1711
    %v1776 = vcvt.s32.f32 %v1712
    %v1777 = vcvt.s32.f32 %v1713
    %v1778 = vcvt.s32.f32 %v1714
    %v1779 = vcvt.s32.f32 %v1715
    %v1780 = vcvt.s32.f32 %v1716
    %v1781 = vcvt.s32.f32 %v1717
    %v1782 = vcvt.s32.f32 %v1718
    %v1783 = vcvt.s32.f32 %v1719
    %v1784 = vcvt.s32.f32 %v1720
    %v1785 = vcvt.s32.f32 %v1721
    %v1786 = vcvt.s32.f32 %v1722
    %v1787 = vcvt.s32.f32 %v1723
    %v1788 = vcvt.s32.f32 %v1724
    %v1789 = vcvt.s32.f32 %v1725
    %v1790 = vcvt.s32.f32 %v1726
    %v1791 = vcvt.s32.f32 %v1727
    %v1792 = vcvt.s32.f32 %v1728
    %v1793 = vcvt.s32.f32 %v1729
    %v1794 = vcvt.s32.f32 %v1730
    %v1795 = vcvt.s32.f32 %v1731
    %v1796 = vcvt.s32.f32 %v1732
    %v1797 = vcvt.s32.f32 %v1733
    %v1798 = vcvt.s32.f32 %v1734
    %v1799 = vcvt.s32.f32 %v1735
    %v1800 = vcvt.s32.f32 %v1736
    %v1801 = vcvt.s32.f32 %v1737
    %v1802 = vcvt.s32.f32 %v1738
    %v1803 = vcvt.s32.f32 %v1739
    %v1804 = vcvt.s32.f32 %v1740
    %v1805 = vcvt.s32.f32 %v1741
    %v1806 = vcvt.s32.f32 %v1742
    %v1807 = vcvt.s32.f32 %v1743
    %v1808 = vcvt.s32.f32 %v1744
    %v1809 = vcvt.s32.f32 %v1745
    %v1810 = vcvt.s32.f32 %v1746
    %v1811 = vcvt.s32.f32 %v1747
    %v1812 = vcvt.s32.f32 %v1748
    %v1813 = vcvt.s32.f32 %v1749
    %v1814 = vcvt.s32.f32 %v1750
    %v1815 = vcvt.s32.f32 %v1751
    %v1816 = vcvt.s32.f32 %v1752
    %v1817 = vcvt.s32.f32 %v1753
    %v1818 = vcvt.s32.f32 %v1754
    %v1819 = vcvt.s32.f32 %v1755
    %v1820 = vcvt.s32.f32 %v1756
    %v1821 = vcvt.s32.f32 %v1757
    %v1822 = vcvt.s32.f32 %v1758
    %v1823 = vcvt.s32.f32 %v1759
    %v1824 = vcvt.s32.f32 %v1760
    %v1825 = vcvt.s32.f32 %v1761
    %v1826 = vcvt.s32.f32 %v1762
    %v1827 = vcvt.s32.f32 %v1763
    %v1828 = vcvt.s32.f32 %v1764
    %v1829 = vcvt.s32.f32 %v1765
    %v1830 = vcvt.s32.f32 %v1766
    %v1831 = vcvt.s32.f32 %v1767
    %v1832 = vcvt.s32.f32 %v1768
    %v1833 = vcvt.s32.f32 %v1769
    %v1834 = vcvt.s32.f32 %v1770
    %v1835 = vcvt.s32.f32 %v1771
    %v1836 = vcvt.s32.f32 %v1772
    %v1837 = vcvt.s32.f32 %v1773
    %1839 = vset.pattern.permute.xlu0 0
    %1840 = vperm.xlu0 %1839, %v43
    %v1841 = vpop.permute.xlu0 %1840
    %1844 = vset.pattern.permute.xlu0 0
    %1845 = vperm.xlu0 %1844, %v44
    %v1846 = vpop.permute.xlu0 %1845
    %1849 = vset.pattern.permute.xlu0 0
    %1850 = vperm.xlu0 %1849, %v45
    %v1851 = vpop.permute.xlu0 %1850
    %1854 = vset.pattern.permute.xlu0 0
    %1855 = vperm.xlu0 %1854, %v46
    %v1856 = vpop.permute.xlu0 %1855
    %1859 = vset.pattern.permute.xlu0 0
    %1860 = vperm.xlu0 %1859, %v47
    %v1861 = vpop.permute.xlu0 %1860
    %1864 = vset.pattern.permute.xlu0 0
    %1865 = vperm.xlu0 %1864, %v48
    %v1866 = vpop.permute.xlu0 %1865
    %1869 = vset.pattern.permute.xlu0 0
    %1870 = vperm.xlu0 %1869, %v49
    %v1871 = vpop.permute.xlu0 %1870
    %1874 = vset.pattern.permute.xlu0 0
    %1875 = vperm.xlu0 %1874, %v50
    %v1876 = vpop.permute.xlu0 %1875
    %v1878 = vmul.f32 %v1774, %v1841
    %v1879 = vmul.f32 %v1775, %v1846
    %v1880 = vmul.f32 %v1776, %v1851
    %v1881 = vmul.f32 %v1777, %v1856
    %v1882 = vmul.f32 %v1778, %v1861
    %v1883 = vmul.f32 %v1779, %v1866
    %v1884 = vmul.f32 %v1780, %v1871
    %v1885 = vmul.f32 %v1781, %v1876
    %v1886 = vmul.f32 %v1782, %v1841
    %v1887 = vmul.f32 %v1783, %v1846
    %v1888 = vmul.f32 %v1784, %v1851
    %v1889 = vmul.f32 %v1785, %v1856
    %v1890 = vmul.f32 %v1786, %v1861
    %v1891 = vmul.f32 %v1787, %v1866
    %v1892 = vmul.f32 %v1788, %v1871
    %v1893 = vmul.f32 %v1789, %v1876
    %v1894 = vmul.f32 %v1790, %v1841
    %v1895 = vmul.f32 %v1791, %v1846
    %v1896 = vmul.f32 %v1792, %v1851
    %v1897 = vmul.f32 %v1793, %v1856
    %v1898 = vmul.f32 %v1794, %v1861
    %v1899 = vmul.f32 %v1795, %v1866
    %v1900 = vmul.f32 %v1796, %v1871
    %v1901 = vmul.f32 %v1797, %v1876
    %v1902 = vmul.f32 %v1798, %v1841
    %v1903 = vmul.f32 %v1799, %v1846
    %v1904 = vmul.f32 %v1800, %v1851
    %v1905 = vmul.f32 %v1801, %v1856
    %v1906 = vmul.f32 %v1802, %v1861
    %v1907 = vmul.f32 %v1803, %v1866
    %v1908 = vmul.f32 %v1804, %v1871
    %v1909 = vmul.f32 %v1805, %v1876
    %v1910 = vmul.f32 %v1806, %v1841
    %v1911 = vmul.f32 %v1807, %v1846
    %v1912 = vmul.f32 %v1808, %v1851
    %v1913 = vmul.f32 %v1809, %v1856
    %v1914 = vmul.f32 %v1810, %v1861
    %v1915 = vmul.f32 %v1811, %v1866
    %v1916 = vmul.f32 %v1812, %v1871
    %v1917 = vmul.f32 %v1813, %v1876
    %v1918 = vmul.f32 %v1814, %v1841
    %v1919 = vmul.f32 %v1815, %v1846
    %v1920 = vmul.f32 %v1816, %v1851
    %v1921 = vmul.f32 %v1817, %v1856
    %v1922 = vmul.f32 %v1818, %v1861
    %v1923 = vmul.f32 %v1819, %v1866
    %v1924 = vmul.f32 %v1820, %v1871
    %v1925 = vmul.f32 %v1821, %v1876
    %v1926 = vmul.f32 %v1822, %v1841
    %v1927 = vmul.f32 %v1823, %v1846
    %v1928 = vmul.f32 %v1824, %v1851
    %v1929 = vmul.f32 %v1825, %v1856
    %v1930 = vmul.f32 %v1826, %v1861
    %v1931 = vmul.f32 %v1827, %v1866
    %v1932 = vmul.f32 %v1828, %v1871
    %v1933 = vmul.f32 %v1829, %v1876
    %v1934 = vmul.f32 %v1830, %v1841
    %v1935 = vmul.f32 %v1831, %v1846
    %v1936 = vmul.f32 %v1832, %v1851
    %v1937 = vmul.f32 %v1833, %v1856
    %v1938 = vmul.f32 %v1834, %v1861
    %v1939 = vmul.f32 %v1835, %v1866
    %v1940 = vmul.f32 %v1836, %v1871
    %v1941 = vmul.f32 %v1837, %v1876
    %v1942 = vsel %vm293, %v1878, 0.0
    %v1943 = vsel %vm293, %v1879, 0.0
    %v1944 = vadd.f32 %v1942, %v1943
    %v1945 = vsel %vm293, %v1880, 0.0
    %v1946 = vadd.f32 %v1944, %v1945
    %v1947 = vsel %vm293, %v1881, 0.0
    %v1948 = vadd.f32 %v1946, %v1947
    %v1949 = vsel %vm293, %v1882, 0.0
    %v1950 = vadd.f32 %v1948, %v1949
    %v1951 = vsel %vm293, %v1883, 0.0
    %v1952 = vadd.f32 %v1950, %v1951
    %v1953 = vsel %vm293, %v1884, 0.0
    %v1954 = vadd.f32 %v1952, %v1953
    %v1955 = vsel %vm293, %v1885, 0.0
    %v1956 = vadd.f32 %v1954, %v1955
    %v1957 = vrot.slane %v1956, 4
    %v1958 = vadd.f32 %v1956, %v1957
    %v1959 = vrot.slane %v1958, 2
    %v1960 = vadd.f32 %v1958, %v1959
    %v1961 = vrot.slane %v1960, 1
    %v1962 = vadd.f32 %v1960, %v1961
    %v1963 = vsel %vm293, %v1886, 0.0
    %v1964 = vsel %vm293, %v1887, 0.0
    %v1965 = vadd.f32 %v1963, %v1964
    %v1966 = vsel %vm293, %v1888, 0.0
    %v1967 = vadd.f32 %v1965, %v1966
    %v1968 = vsel %vm293, %v1889, 0.0
    %v1969 = vadd.f32 %v1967, %v1968
    %v1970 = vsel %vm293, %v1890, 0.0
    %v1971 = vadd.f32 %v1969, %v1970
    %v1972 = vsel %vm293, %v1891, 0.0
    %v1973 = vadd.f32 %v1971, %v1972
    %v1974 = vsel %vm293, %v1892, 0.0
    %v1975 = vadd.f32 %v1973, %v1974
    %v1976 = vsel %vm293, %v1893, 0.0
    %v1977 = vadd.f32 %v1975, %v1976
    %v1978 = vrot.slane %v1977, 4
    %v1979 = vadd.f32 %v1977, %v1978
    %v1980 = vrot.slane %v1979, 2
    %v1981 = vadd.f32 %v1979, %v1980
    %v1982 = vrot.slane %v1981, 1
    %v1983 = vadd.f32 %v1981, %v1982
    %v1984 = vsel %vm293, %v1894, 0.0
    %v1985 = vsel %vm293, %v1895, 0.0
    %v1986 = vadd.f32 %v1984, %v1985
    %v1987 = vsel %vm293, %v1896, 0.0
    %v1988 = vadd.f32 %v1986, %v1987
    %v1989 = vsel %vm293, %v1897, 0.0
    %v1990 = vadd.f32 %v1988, %v1989
    %v1991 = vsel %vm293, %v1898, 0.0
    %v1992 = vadd.f32 %v1990, %v1991
    %v1993 = vsel %vm293, %v1899, 0.0
    %v1994 = vadd.f32 %v1992, %v1993
    %v1995 = vsel %vm293, %v1900, 0.0
    %v1996 = vadd.f32 %v1994, %v1995
    %v1997 = vsel %vm293, %v1901, 0.0
    %v1998 = vadd.f32 %v1996, %v1997
    %v1999 = vrot.slane %v1998, 4
    %v2000 = vadd.f32 %v1998, %v1999
    %v2001 = vrot.slane %v2000, 2
    %v2002 = vadd.f32 %v2000, %v2001
    %v2003 = vrot.slane %v2002, 1
    %v2004 = vadd.f32 %v2002, %v2003
    %v2005 = vsel %vm293, %v1902, 0.0
    %v2006 = vsel %vm293, %v1903, 0.0
    %v2007 = vadd.f32 %v2005, %v2006
    %v2008 = vsel %vm293, %v1904, 0.0
    %v2009 = vadd.f32 %v2007, %v2008
    %v2010 = vsel %vm293, %v1905, 0.0
    %v2011 = vadd.f32 %v2009, %v2010
    %v2012 = vsel %vm293, %v1906, 0.0
    %v2013 = vadd.f32 %v2011, %v2012
    %v2014 = vsel %vm293, %v1907, 0.0
    %v2015 = vadd.f32 %v2013, %v2014
    %v2016 = vsel %vm293, %v1908, 0.0
    %v2017 = vadd.f32 %v2015, %v2016
    %v2018 = vsel %vm293, %v1909, 0.0
    %v2019 = vadd.f32 %v2017, %v2018
    %v2020 = vrot.slane %v2019, 4
    %v2021 = vadd.f32 %v2019, %v2020
    %v2022 = vrot.slane %v2021, 2
    %v2023 = vadd.f32 %v2021, %v2022
    %v2024 = vrot.slane %v2023, 1
    %v2025 = vadd.f32 %v2023, %v2024
    %v2026 = vsel %vm293, %v1910, 0.0
    %v2027 = vsel %vm293, %v1911, 0.0
    %v2028 = vadd.f32 %v2026, %v2027
    %v2029 = vsel %vm293, %v1912, 0.0
    %v2030 = vadd.f32 %v2028, %v2029
    %v2031 = vsel %vm293, %v1913, 0.0
    %v2032 = vadd.f32 %v2030, %v2031
    %v2033 = vsel %vm293, %v1914, 0.0
    %v2034 = vadd.f32 %v2032, %v2033
    %v2035 = vsel %vm293, %v1915, 0.0
    %v2036 = vadd.f32 %v2034, %v2035
    %v2037 = vsel %vm293, %v1916, 0.0
    %v2038 = vadd.f32 %v2036, %v2037
    %v2039 = vsel %vm293, %v1917, 0.0
    %v2040 = vadd.f32 %v2038, %v2039
    %v2041 = vrot.slane %v2040, 4
    %v2042 = vadd.f32 %v2040, %v2041
    %v2043 = vrot.slane %v2042, 2
    %v2044 = vadd.f32 %v2042, %v2043
    %v2045 = vrot.slane %v2044, 1
    %v2046 = vadd.f32 %v2044, %v2045
    %v2047 = vsel %vm293, %v1918, 0.0
    %v2048 = vsel %vm293, %v1919, 0.0
    %v2049 = vadd.f32 %v2047, %v2048
    %v2050 = vsel %vm293, %v1920, 0.0
    %v2051 = vadd.f32 %v2049, %v2050
    %v2052 = vsel %vm293, %v1921, 0.0
    %v2053 = vadd.f32 %v2051, %v2052
    %v2054 = vsel %vm293, %v1922, 0.0
    %v2055 = vadd.f32 %v2053, %v2054
    %v2056 = vsel %vm293, %v1923, 0.0
    %v2057 = vadd.f32 %v2055, %v2056
    %v2058 = vsel %vm293, %v1924, 0.0
    %v2059 = vadd.f32 %v2057, %v2058
    %v2060 = vsel %vm293, %v1925, 0.0
    %v2061 = vadd.f32 %v2059, %v2060
    %v2062 = vrot.slane %v2061, 4
    %v2063 = vadd.f32 %v2061, %v2062
    %v2064 = vrot.slane %v2063, 2
    %v2065 = vadd.f32 %v2063, %v2064
    %v2066 = vrot.slane %v2065, 1
    %v2067 = vadd.f32 %v2065, %v2066
    %v2068 = vsel %vm293, %v1926, 0.0
    %v2069 = vsel %vm293, %v1927, 0.0
    %v2070 = vadd.f32 %v2068, %v2069
    %v2071 = vsel %vm293, %v1928, 0.0
    %v2072 = vadd.f32 %v2070, %v2071
    %v2073 = vsel %vm293, %v1929, 0.0
    %v2074 = vadd.f32 %v2072, %v2073
    %v2075 = vsel %vm293, %v1930, 0.0
    %v2076 = vadd.f32 %v2074, %v2075
    %v2077 = vsel %vm293, %v1931, 0.0
    %v2078 = vadd.f32 %v2076, %v2077
    %v2079 = vsel %vm293, %v1932, 0.0
    %v2080 = vadd.f32 %v2078, %v2079
    %v2081 = vsel %vm293, %v1933, 0.0
    %v2082 = vadd.f32 %v2080, %v2081
    %v2083 = vrot.slane %v2082, 4
    %v2084 = vadd.f32 %v2082, %v2083
    %v2085 = vrot.slane %v2084, 2
    %v2086 = vadd.f32 %v2084, %v2085
    %v2087 = vrot.slane %v2086, 1
    %v2088 = vadd.f32 %v2086, %v2087
    %v2089 = vsel %vm293, %v1934, 0.0
    %v2090 = vsel %vm293, %v1935, 0.0
    %v2091 = vadd.f32 %v2089, %v2090
    %v2092 = vsel %vm293, %v1936, 0.0
    %v2093 = vadd.f32 %v2091, %v2092
    %v2094 = vsel %vm293, %v1937, 0.0
    %v2095 = vadd.f32 %v2093, %v2094
    %v2096 = vsel %vm293, %v1938, 0.0
    %v2097 = vadd.f32 %v2095, %v2096
    %v2098 = vsel %vm293, %v1939, 0.0
    %v2099 = vadd.f32 %v2097, %v2098
    %v2100 = vsel %vm293, %v1940, 0.0
    %v2101 = vadd.f32 %v2099, %v2100
    %v2102 = vsel %vm293, %v1941, 0.0
    %v2103 = vadd.f32 %v2101, %v2102
    %v2104 = vrot.slane %v2103, 4
    %v2105 = vadd.f32 %v2103, %v2104
    %v2106 = vrot.slane %v2105, 2
    %v2107 = vadd.f32 %v2105, %v2106
    %v2108 = vrot.slane %v2107, 1
    %v2109 = vadd.f32 %v2107, %v2108
    %v2110 = vadd.f32 %v1489, %v1962
    %v2111 = vadd.f32 %v1496, %v1983
    %v2112 = vadd.f32 %v1503, %v2004
    %v2113 = vadd.f32 %v1510, %v2025
    %v2114 = vadd.f32 %v1517, %v2046
    %v2115 = vadd.f32 %v1524, %v2067
    %v2116 = vadd.f32 %v1531, %v2088
    %v2117 = vadd.f32 %v1538, %v2109
    %vm2126 = vcmask 1041409
    %v2127 = vsel %vm2126, %v2111, %v2110
    %vm2128 = vcmask 1042434
    %v2129 = vsel %vm2128, %v2112, %v2127
    %vm2130 = vcmask 1043459
    %v2131 = vsel %vm2130, %v2113, %v2129
    %vm2132 = vcmask 1044484
    %v2133 = vsel %vm2132, %v2114, %v2131
    %vm2134 = vcmask 1045509
    %v2135 = vsel %vm2134, %v2115, %v2133
    %vm2136 = vcmask 1046534
    %v2137 = vsel %vm2136, %v2116, %v2135
    %vm2138 = vcmask 1047559
    %v2139 = vsel %vm2138, %v2117, %v2137
    %v2141 = vmul.f32 %v32, %v2139
    %v2142 = vsel %vm293, %v2141, 0.0
    %v2143 = vrot.slane %v2142, 4
    %v2144 = vadd.f32 %v2142, %v2143
    %v2145 = vrot.slane %v2144, 2
    %v2146 = vadd.f32 %v2144, %v2145
    %v2147 = vrot.slane %v2146, 1
    %v2148 = vadd.f32 %v2146, %v2147
    %v2149 = vsel %vm293, %v32, 0.0
    %v2150 = vrot.slane %v2149, 4
    %v2151 = vadd.f32 %v2149, %v2150
    %v2152 = vrot.slane %v2151, 2
    %v2153 = vadd.f32 %v2151, %v2152
    %v2154 = vrot.slane %v2153, 1
    %v2155 = vadd.f32 %v2153, %v2154
    %v2156 = vcvt.f32.s32.to.zero.pseudo %v2155
    %vm2157 = vcmp.eq.s32.totalorder %v53, %v2156
    %vm2158 = vcmp.eq.s32.totalorder %v1544, %v2156
    %v2159 = vsel %vm2157, %v33, 0
    %v2160 = vsel %vm2158, %v34, 0
    %v2161 = vsel %vm293, %v2159, 0
    %vm2162 = vcmask 8192
    %v2163 = vsel %vm2162, %v2160, 0
    %v2164 = vadd.s32 %v2161, %v2163
    %v2165 = vrot.slane %v2164, 4
    %v2166 = vadd.s32 %v2164, %v2165
    %v2167 = vrot.slane %v2166, 2
    %v2168 = vadd.s32 %v2166, %v2167
    %v2169 = vrot.slane %v2168, 1
    %v2170 = vadd.s32 %v2168, %v2169
    %vm2171 = vcmp.eq.s32.totalorder %v53, %v2170
    %v2172 = vsel %vm2171, 1, 0
    %v2173 = vcvt.s32.f32 %v2172
    %v2174 = vmul.f32 %v1333, %v2173
    %v2175 = vsel %vm293, %v2174, 0.0
    %v2176 = vrot.slane %v2175, 4
    %v2177 = vadd.f32 %v2175, %v2176
    %v2178 = vrot.slane %v2177, 2
    %v2179 = vadd.f32 %v2177, %v2178
    %v2180 = vrot.slane %v2179, 1
    %v2181 = vadd.f32 %v2179, %v2180
    %v2182 = vadd.f32 %v2148, %v2181
    %v2183 = vsub.f32 %v1355, %v2182
    %2184 = vst.msk [vmem:[#allocation2] sm:$0x1] %vm2162, %v2183
    // Predicated region
    $region26: #{tpu_custom_call.1} parent=1 // pred_check
      _
    $region27: #{tpu_custom_call.1} parent=1 // pred_check_branch
      %2186 = sbr.rel (0) target = $region29
    $region28: #{tpu_custom_call.1} parent=1 // pred_region
      %s2188 = ssub.s32 16, 16
      %2189 = vsyncadd [#allocation3], %s2188
      %s2191 = sshll.u32 [#allocation2], 4
      %s2192 = int_to_ptr.vmem [resolvable:$true] %s2191
      %2194 = dma.vmem_to_hbm [thread:$0]  %s2192, 16, %s6, [#allocation3]
    $region29: #{tpu_custom_call.1} parent=1 // pred_fallthru
      _
    // Predicated region
    $region30: #{tpu_custom_call.1} parent=1 // pred_check
      _
    $region31: #{tpu_custom_call.1} parent=1 // pred_check_branch
      %2196 = sbr.rel (0) target = $region33
    $region32: #{tpu_custom_call.1} parent=1 // pred_region
      %2197 = dma.done [#allocation3], 16
    $region33: #{tpu_custom_call.1} parent=1 // pred_fallthru
      _
    %2198 = vsyncpa [#allocation3], 1

</llo_original>
